<compile_context>
chip_gen: v5e
topology: v5e:2x2
jax: 0.10.0
libtpu: 0.0.40
codegen_flags: <defaults>
</compile_context>

<pallas_src>
import functools

import jax
import jax.numpy as jnp
from jax.experimental import pallas as pl
from jax.experimental.pallas import tpu as pltpu

BN_EPS = 1e-5          # nn.BatchNorm1d default eps (training-mode batch stats)
FP_EPS = 1e-8          # PointNetFeaturePropagation 1/(d + 1e-8)
LANE = 128


# ----------------------------- host-side helpers -----------------------------
def _round_up(x, m):
    return (x + m - 1) // m * m


def _pad_axis(a, axis, target, value=0.0):
    pad = target - a.shape[axis]
    if pad <= 0:
        return a
    cfg = [(0, 0)] * a.ndim
    cfg[axis] = (0, pad)
    return jnp.pad(a, cfg, constant_values=value)


@functools.lru_cache(maxsize=1)
def _vmem_limit_bytes():
    """3/4 of this generation's VMEM: ~96 MiB on v5e/v6e (128 MiB), 48 MiB on v7x."""
    try:
        cap = int(pltpu.get_tpu_info().vmem_capacity_bytes)
    except Exception:  # unknown backend / older jax: v7x-safe default
        cap = 64 * 1024 * 1024
    return (cap // 4) * 3


def _fold_bn_affine(p, w, b, g, be):
    """Training-mode BatchNorm stats of y = p @ w + b over (batch, points), derived
    from sum(p) and the Gram matrix p^T p, folded with the affine into y*scale+shift.
    # TODO(synk): switch to a Welford-style accumulation if B*N is huge and the
    #             feature means dominate the standard deviations (cancellation).
    """
    p = p.astype(jnp.float32)
    w = w.astype(jnp.float32)
    b = b.astype(jnp.float32)
    g = g.astype(jnp.float32)
    be = be.astype(jnp.float32)
    cnt = float(p.shape[0] * p.shape[1])
    mean_x = jnp.sum(p, axis=(0, 1)) / cnt
    gram = jnp.einsum("bni,bnj->ij", p, p,
                      precision=jax.lax.Precision.HIGHEST) / cnt
    cov = gram - jnp.outer(mean_x, mean_x)
    mu = mean_x @ w + b                                           # E[y] per channel
    var = jnp.maximum(jnp.einsum("ic,ij,jc->c", w, cov, w,
                                 precision=jax.lax.Precision.HIGHEST), 0.0)
    scale = g * jax.lax.rsqrt(var + BN_EPS)
    shift = be + scale * (b - mu)
    return scale, shift


# ------------------------- pass A: feats1 (fc1 branch) -----------------------
def _fc_apply_kernel(p_ref, w_ref, s_ref, t_ref, out_ref):
    """ReLU((p @ w) * s + t) on one (batch, N1-chunk) block; BN folded into s, t."""
    y = jnp.dot(p_ref[0], w_ref[...], preferred_element_type=jnp.float32)
    out_ref[0, 0] = jnp.maximum(y * s_ref[...] + t_ref[...],
                                0.0).astype(out_ref.dtype)


# ----------------- pass B: fc2 branch + 3-NN interpolation + add -------------
def _transition_up_main_kernel(xyz1c_ref, feats1_ref, xyz2_ref, p2_ref,
                               w2_ref, s2_ref, t2_ref, out_ref,
                               *, chunk, n_chunks, approx_recip):
    # fc2 branch on this (batch, N2-tile); BN affine + bias folded into s2/t2.
    y2 = jnp.dot(p2_ref[0], w2_ref[...], preferred_element_type=jnp.float32)
    feats2 = jnp.maximum(y2 * s2_ref[...] + t2_ref[...], 0.0)         # [tn2, cp]
    tn2, cp = feats2.shape

    x2 = xyz2_ref[0]                                                  # [tn2, 3]
    x2x, x2y, x2z = x2[:, 0:1], x2[:, 1:2], x2[:, 2:3]
    # f32 lane indices (exact for indices < 2^24); hoisted out of both loops.
    lane = jax.lax.broadcasted_iota(jnp.int32, (tn2, chunk), 1).astype(jnp.float32)
    big = jnp.float32(3.0e38)

    def insert(cd, ci, d0, i0, d1, i1, d2, i2):
        # Insert candidate (cd, ci) into the sorted running top-3. Strict '<'
        # keeps earlier (lower-index) candidates first on ties (stable, matches
        # torch.sort / jnp.argsort tie-breaking). All operands are [tn2, 1].
        b0, b1, b2 = cd < d0, cd < d1, cd < d2
        nd2 = jnp.where(b1, d1, jnp.where(b2, cd, d2))
        ni2 = jnp.where(b1, i1, jnp.where(b2, ci, i2))
        nd1 = jnp.where(b0, d0, jnp.where(b1, cd, d1))
        ni1 = jnp.where(b0, i0, jnp.where(b1, ci, i1))
        nd0 = jnp.where(b0, cd, d0)
        ni0 = jnp.where(b0, ci, i0)
        return nd0, ni0, nd1, ni1, nd2, ni2

    # ---- phase 1: streaming 3-NN over N1 chunks (temporaries are [tn2, chunk]).
    def topk_body(k, carry):
        d0, i0, d1, i1, d2, i2 = carry
        xc = xyz1c_ref[0, k]                                          # [3, chunk]
        dx = x2x - xc[0:1, :]
        dy = x2y - xc[1:2, :]
        dz = x2z - xc[2:3, :]
        dd = dx * dx + dy * dy + dz * dz                              # [tn2, chunk]
        basef = (k * chunk).astype(jnp.float32)
        for _ in range(3):      # chunk-local 3 smallest, first-occurrence ties
            dmin = jnp.min(dd, axis=-1, keepdims=True)
            first = jnp.min(jnp.where(dd == dmin, lane, float(chunk)),
                            axis=-1, keepdims=True)
            dd = jnp.where(lane == first, big, dd)
            d0, i0, d1, i1, d2, i2 = insert(dmin, first + basef,
                                            d0, i0, d1, i1, d2, i2)
        return d0, i0, d1, i1, d2, i2

    init = (jnp.full((tn2, 1), big, jnp.float32), jnp.zeros((tn2, 1), jnp.float32),
            jnp.full((tn2, 1), big, jnp.float32), jnp.zeros((tn2, 1), jnp.float32),
            jnp.full((tn2, 1), big, jnp.float32), jnp.zeros((tn2, 1), jnp.float32))
    d0, i0, d1, i1, d2, i2 = jax.lax.fori_loop(0, n_chunks, topk_body, init,
                                               unroll=n_chunks <= 4)

    # Inverse-distance weights; normalization deferred until after the matmul
    # (one [tn2, cp] scale instead of a [tn2, N1] divide), reciprocals on the EUP.
    r0 = pl.reciprocal(d0 + FP_EPS, approx=approx_recip)
    r1 = pl.reciprocal(d1 + FP_EPS, approx=approx_recip)
    r2 = pl.reciprocal(d2 + FP_EPS, approx=approx_recip)
    inv_norm = pl.reciprocal(r0 + r1 + r2, approx=approx_recip)       # [tn2, 1]

    # ---- phase 2: interpolation as chunked MXU matmuls against resident feats1.
    f_dt = feats1_ref.dtype

    def interp_body(k, acc):
        g = lane + (k * chunk).astype(jnp.float32)                    # global idx
        w = jnp.where(g == i0, r0, 0.0)
        w = jnp.where(g == i1, r1, w)
        w = jnp.where(g == i2, r2, w)                                 # [tn2, chunk]
        f1c = feats1_ref[0, k]                                        # [chunk, cp]
        return acc + jnp.dot(w.astype(f_dt), f1c,
                             preferred_element_type=jnp.float32)

    interp = jax.lax.fori_loop(0, n_chunks, interp_body,
                               jnp.zeros((tn2, cp), jnp.float32),
                               unroll=n_chunks <= 4)

    out_ref[0] = (interp * inv_norm + feats2).astype(out_ref.dtype)


# --------------------------------- wrapper -----------------------------------
@functools.partial(jax.jit, static_argnames=("use_bf16", "n2_tile", "n1_chunk"))
def transition_up(xyz1, points1, xyz2, points2, params, *,
                  use_bf16=True, n2_tile=256, n1_chunk=512):
    B, N1, dim1 = points1.shape
    _, N2, dim2 = points2.shape
    dim_out = params["w1"].shape[1]
    mxu_dt = jnp.bfloat16 if use_bf16 else jnp.float32
    cp = _round_up(dim_out, LANE)                       # lane-dense channel count

    # ---- BN batch statistics (Gram form) + affine fold: tiny XLA reductions.
    s1, t1 = _fold_bn_affine(points1, params["w1"], params["b1"],
                             params["g1"], params["be1"])
    s2, t2 = _fold_bn_affine(points2, params["w2"], params["b2"],
                             params["g2"], params["be2"])

    # ---- tiling / padding choices (no exact-divisor hunting: pad and mask).
    chunk = min(max(LANE, _round_up(n1_chunk, LANE)), _round_up(N1, LANE))
    n1p = _round_up(N1, chunk)
    n_chunks = n1p // chunk
    tn2 = min(max(8, _round_up(n2_tile, 8)), _round_up(N2, 8))
    n2p = _round_up(N2, tn2)
    nj = n2p // tn2
    vmem_limit = _vmem_limit_bytes()

    # Channel-padded (lane-dense) params; padded channels get scale = shift = 0.
    w1 = _pad_axis(params["w1"].astype(mxu_dt), 1, cp)
    w2 = _pad_axis(params["w2"].astype(mxu_dt), 1, cp)
    s1 = _pad_axis(s1.reshape(1, -1), 1, cp)
    t1 = _pad_axis(t1.reshape(1, -1), 1, cp)
    s2 = _pad_axis(s2.reshape(1, -1), 1, cp)
    t2 = _pad_axis(t2.reshape(1, -1), 1, cp)

    # Point-padded inputs; padded coarse coords are pushed far away so they can
    # never be a 3-NN pick (their interpolation weight stays exactly zero).
    p1 = _pad_axis(points1.astype(mxu_dt), 1, n1p)
    p2 = _pad_axis(points2.astype(mxu_dt), 1, n2p)
    xyz1p = _pad_axis(xyz1.astype(jnp.float32), 1, n1p, value=1.0e6)
    xyz1c = jnp.transpose(xyz1p.reshape(B, n_chunks, chunk, 3), (0, 1, 3, 2))
    xyz2p = _pad_axis(xyz2.astype(jnp.float32), 1, n2p)

    # ---- pass A: feats1 = ReLU((points1 @ w1) * s1 + t1), tiled over (B, N1).
    feats1 = pl.pallas_call(
        _fc_apply_kernel,
        out_shape=jax.ShapeDtypeStruct((B, n_chunks, chunk, cp), mxu_dt),
        grid=(B, n_chunks),
        in_specs=[pl.BlockSpec((1, chunk, dim1), lambda b, i: (b, i, 0)),
                  pl.BlockSpec((dim1, cp), lambda b, i: (0, 0)),
                  pl.BlockSpec((1, cp), lambda b, i: (0, 0)),
                  pl.BlockSpec((1, cp), lambda b, i: (0, 0))],
        out_specs=pl.BlockSpec((1, 1, chunk, cp), lambda b, i: (b, i, 0, 0)),
        compiler_params=pltpu.CompilerParams(
            dimension_semantics=("parallel", "parallel"),
            vmem_limit_bytes=vmem_limit),
    )(p1, w1, s1, t1)

    # ---- pass B: fc2 branch + 3-NN inverse-distance interpolation + add.
    kernel = functools.partial(_transition_up_main_kernel, chunk=chunk,
                               n_chunks=n_chunks, approx_recip=use_bf16)
    out = pl.pallas_call(
        kernel,
        out_shape=jax.ShapeDtypeStruct((B, n2p, cp), jnp.float32),
        grid=(B, nj),
        in_specs=[
            # Per-batch resident blocks (block index constant over j -> DMA'd once
            # per batch). TODO(synk): for very large N1*cp pass feats1 with
            # memory_space=pl.ANY and stream chunks via single-buffered manual DMA.
            pl.BlockSpec((1, n_chunks, 3, chunk), lambda b, j: (b, 0, 0, 0)),   # xyz1 (chunked, transposed)
            pl.BlockSpec((1, n_chunks, chunk, cp), lambda b, j: (b, 0, 0, 0)),  # feats1
            pl.BlockSpec((1, tn2, 3), lambda b, j: (b, j, 0)),                  # xyz2 tile
            pl.BlockSpec((1, tn2, dim2), lambda b, j: (b, j, 0)),               # points2 tile
            pl.BlockSpec((dim2, cp), lambda b, j: (0, 0)),                      # w2
            pl.BlockSpec((1, cp), lambda b, j: (0, 0)),                         # s2
            pl.BlockSpec((1, cp), lambda b, j: (0, 0)),                         # t2
        ],
        out_specs=pl.BlockSpec((1, tn2, cp), lambda b, j: (b, j, 0)),
        compiler_params=pltpu.CompilerParams(
            # Batch axis owns the per-batch resident blocks -> give it the megacore
            # split; keep j "arbitrary" so two v7x cores never duplicate feats1.
            dimension_semantics=("parallel", "arbitrary"),
            vmem_limit_bytes=vmem_limit),
    )(xyz1c, feats1, xyz2p, p2, w2, s2, t2)

    # TODO(synk): consumers that accept the lane-dense (n2p, cp)-padded layout can
    #             skip this depad slice (saves one full HBM round-trip in XLA).
    return out[:, :N2, :dim_out]


# ------------------------- pure-JAX reference (verification) -----------------
def _ref_linear_bn_relu(x, w, b, gamma, beta):
    y = jnp.einsum("bnc,ce->bne", x, w,
                   precision=jax.lax.Precision.HIGHEST) + b.reshape(1, 1, -1)
    mu = jnp.mean(y, axis=(0, 1), keepdims=True)
    var = jnp.mean((y - mu) ** 2, axis=(0, 1), keepdims=True)
    y_hat = (y - mu) * jax.lax.rsqrt(var + BN_EPS)
    return jnp.maximum(gamma.reshape(1, 1, -1) * y_hat + beta.reshape(1, 1, -1), 0.0)


def transition_up_reference(xyz1, points1, xyz2, points2, params):
    f1 = _ref_linear_bn_relu(points1, params["w1"], params["b1"],
                             params["g1"], params["be1"])
    f2 = _ref_linear_bn_relu(points2, params["w2"], params["b2"],
                             params["g2"], params["be2"])
    d = (jnp.sum(xyz2 ** 2, -1, keepdims=True)
         + jnp.sum(xyz1 ** 2, -1)[:, None, :]
         - 2.0 * jnp.einsum("bnc,bmc->bnm", xyz2, xyz1,
                            precision=jax.lax.Precision.HIGHEST))
    idx = jnp.argsort(d, axis=-1)[:, :, :3]                          # [B, N2, 3]
    dists = jnp.take_along_axis(d, idx, axis=-1)
    recip = 1.0 / (dists + FP_EPS)
    weight = recip / jnp.sum(recip, axis=-1, keepdims=True)
    gathered = jnp.take_along_axis(f1[:, None, :, :], idx[..., None], axis=2)
    interp = jnp.sum(gathered * weight[..., None], axis=2)
    return interp + f2


if __name__ == "__main__":
    B, N1, N2 = 2, 8, 16
    dim1, dim2, dim_out = 16, 8, 32

    key = jax.random.PRNGKey(0)
    ks = jax.random.split(key, 12)

    xyz1 = jax.random.normal(ks[0], (B, N1, 3), jnp.float32)
    points1 = jax.random.normal(ks[1], (B, N1, dim1), jnp.float32)
    xyz2 = jax.random.normal(ks[2], (B, N2, 3), jnp.float32)
    points2 = jax.random.normal(ks[3], (B, N2, dim2), jnp.float32)

    params = {
        # nn.Linear weights stored already transposed: [Cin, Cout]
        "w1": jax.random.normal(ks[4], (dim1, dim_out), jnp.float32) / jnp.sqrt(dim1),
        "b1": 0.1 * jax.random.normal(ks[5], (dim_out,), jnp.float32),
        "g1": 1.0 + 0.1 * jax.random.normal(ks[6], (dim_out,), jnp.float32),
        "be1": 0.1 * jax.random.normal(ks[7], (dim_out,), jnp.float32),
        "w2": jax.random.normal(ks[8], (dim2, dim_out), jnp.float32) / jnp.sqrt(dim2),
        "b2": 0.1 * jax.random.normal(ks[9], (dim_out,), jnp.float32),
        "g2": 1.0 + 0.1 * jax.random.normal(ks[10], (dim_out,), jnp.float32),
        "be2": 0.1 * jax.random.normal(ks[11], (dim_out,), jnp.float32),
    }

    # Strict f32 path (exact-weight semantics) and bf16-MXU fast path.
    out_f32 = jax.block_until_ready(
        transition_up(xyz1, points1, xyz2, points2, params, use_bf16=False))
    out_bf16 = jax.block_until_ready(
        transition_up(xyz1, points1, xyz2, points2, params, use_bf16=True))

    ref = transition_up_reference(xyz1, points1, xyz2, points2, params)
    assert out_f32.shape == (B, N2, dim_out)
    assert out_bf16.shape == (B, N2, dim_out)
    err32 = float(jnp.max(jnp.abs(out_f32 - ref)))
    err16 = float(jnp.max(jnp.abs(out_bf16 - ref)))
    assert jnp.allclose(out_f32, ref, rtol=2e-2, atol=2e-2), err32
    assert jnp.allclose(out_bf16, ref, rtol=6e-2, atol=6e-2), err16

    print("KERNEL_OK")
</pallas_src>

<mosaic_0001>
module attributes {stable_mosaic.version = 11 : i64} {
  func.func @_fc_apply_kernel(%arg0: i32, %arg1: i32, %arg2: memref<1x128x16xf32, #tpu.memory_space<vmem>>, %arg3: memref<16x128xf32, #tpu.memory_space<vmem>>, %arg4: memref<1x128xf32, #tpu.memory_space<vmem>>, %arg5: memref<1x128xf32, #tpu.memory_space<vmem>>, %arg6: memref<1x1x128x128xf32, #tpu.memory_space<vmem>>) attributes {dimension_semantics = [#tpu.dimension_semantics<parallel>, #tpu.dimension_semantics<parallel>], iteration_bounds = array<i64: 2, 1>, scalar_prefetch = 0 : i64, scratch_operands = 0 : i64, tpu.core_type = #tpu.core_type<tc>, window_params = [{transform_indices = @transform_0, window_bounds = array<i64: 1, 128, 16>}, {pipeline_mode = #tpu.pipeline_mode<synchronous>, transform_indices = @transform_1, window_bounds = array<i64: 16, 128>}, {pipeline_mode = #tpu.pipeline_mode<synchronous>, transform_indices = @transform_2, window_bounds = array<i64: 1, 128>}, {pipeline_mode = #tpu.pipeline_mode<synchronous>, transform_indices = @transform_3, window_bounds = array<i64: 1, 128>}, {transform_indices = @transform_4, window_bounds = array<i64: 1, 1, 128, 128>}]} {
    %c0 = arith.constant 0 : index
    %c0_0 = arith.constant 0 : index
    %c0_1 = arith.constant 0 : index
    %0 = vector.load %arg2[%c0, %c0_0, %c0_1] : memref<1x128x16xf32, #tpu.memory_space<vmem>>, vector<1x128x16xf32>
    %1 = vector.shape_cast %0 : vector<1x128x16xf32> to vector<128x16xf32>
    %c0_2 = arith.constant 0 : index
    %c0_3 = arith.constant 0 : index
    %2 = vector.load %arg3[%c0_2, %c0_3] : memref<16x128xf32, #tpu.memory_space<vmem>>, vector<16x128xf32>
    %cst = arith.constant dense<0.000000e+00> : vector<128x128xf32>
    %3 = tpu.matmul %1, %2, %cst {dimension_numbers = #tpu.dot_dimension_numbers<[1], [0], [0], [1], [0, 0, 1, 1], [], []>} : vector<128x16xf32>, vector<16x128xf32>, vector<128x128xf32> -> vector<128x128xf32>
    %c0_4 = arith.constant 0 : index
    %c0_5 = arith.constant 0 : index
    %4 = vector.load %arg4[%c0_4, %c0_5] : memref<1x128xf32, #tpu.memory_space<vmem>>, vector<1x128xf32>
    %5 = vector.broadcast %4 : vector<1x128xf32> to vector<128x128xf32>
    %6 = arith.mulf %3, %5 : vector<128x128xf32>
    %c0_6 = arith.constant 0 : index
    %c0_7 = arith.constant 0 : index
    %7 = vector.load %arg5[%c0_6, %c0_7] : memref<1x128xf32, #tpu.memory_space<vmem>>, vector<1x128xf32>
    %8 = vector.broadcast %7 : vector<1x128xf32> to vector<128x128xf32>
    %9 = arith.addf %6, %8 : vector<128x128xf32>
    %cst_8 = arith.constant 0.000000e+00 : f32
    %10 = vector.broadcast %cst_8 : f32 to vector<128x128xf32>
    %11 = arith.maximumf %9, %10 : vector<128x128xf32>
    %c0_9 = arith.constant 0 : index
    %c0_10 = arith.constant 0 : index
    %c0_11 = arith.constant 0 : index
    %c0_12 = arith.constant 0 : index
    %12 = vector.load %arg6[%c0_9, %c0_10, %c0_11, %c0_12] : memref<1x1x128x128xf32, #tpu.memory_space<vmem>>, vector<1x1x128x128xf32>
    %13 = vector.shape_cast %12 : vector<1x1x128x128xf32> to vector<128x128xf32>
    %14 = vector.shape_cast %11 : vector<128x128xf32> to vector<1x1x128x128xf32>
    tpu.vector_store %arg6[%c0_9, %c0_10, %c0_11, %c0_12], %14 {strides = array<i32>} : memref<1x1x128x128xf32, #tpu.memory_space<vmem>>, vector<1x1x128x128xf32>,
    return
  }
  func.func @transform_0(%arg0: i32, %arg1: i32) -> (i32, i32, i32) {
    %c0_i32 = arith.constant 0 : i32
    %c0_i32_0 = arith.constant 0 : i32
    return %arg0, %arg1, %c0_i32 : i32, i32, i32
  }
  func.func @transform_1(%arg0: i32, %arg1: i32) -> (i32, i32) {
    %c0_i32 = arith.constant 0 : i32
    %c0_i32_0 = arith.constant 0 : i32
    %c0_i32_1 = arith.constant 0 : i32
    return %c0_i32, %c0_i32_0 : i32, i32
  }
  func.func @transform_2(%arg0: i32, %arg1: i32) -> (i32, i32) {
    %c0_i32 = arith.constant 0 : i32
    %c0_i32_0 = arith.constant 0 : i32
    %c0_i32_1 = arith.constant 0 : i32
    return %c0_i32, %c0_i32_0 : i32, i32
  }
  func.func @transform_3(%arg0: i32, %arg1: i32) -> (i32, i32) {
    %c0_i32 = arith.constant 0 : i32
    %c0_i32_0 = arith.constant 0 : i32
    %c0_i32_1 = arith.constant 0 : i32
    return %c0_i32, %c0_i32_0 : i32, i32
  }
  func.func @transform_4(%arg0: i32, %arg1: i32) -> (i32, i32, i32, i32) {
    %c0_i32 = arith.constant 0 : i32
    %c0_i32_0 = arith.constant 0 : i32
    %c0_i32_1 = arith.constant 0 : i32
    return %arg0, %arg1, %c0_i32, %c0_i32_0 : i32, i32, i32, i32
  }
}

module attributes {stable_mosaic.version = 11 : i64} {
  func.func @_transition_up_main_kernel(%arg0: i32, %arg1: i32, %arg2: memref<1x1x3x128xf32, #tpu.memory_space<vmem>>, %arg3: memref<1x1x128x128xf32, #tpu.memory_space<vmem>>, %arg4: memref<1x16x3xf32, #tpu.memory_space<vmem>>, %arg5: memref<1x16x8xf32, #tpu.memory_space<vmem>>, %arg6: memref<8x128xf32, #tpu.memory_space<vmem>>, %arg7: memref<1x128xf32, #tpu.memory_space<vmem>>, %arg8: memref<1x128xf32, #tpu.memory_space<vmem>>, %arg9: memref<1x16x128xf32, #tpu.memory_space<vmem>>) attributes {dimension_semantics = [#tpu.dimension_semantics<parallel>, #tpu.dimension_semantics<arbitrary>], iteration_bounds = array<i64: 2, 1>, scalar_prefetch = 0 : i64, scratch_operands = 0 : i64, tpu.core_type = #tpu.core_type<tc>, window_params = [{transform_indices = @transform_0, window_bounds = array<i64: 1, 1, 3, 128>}, {transform_indices = @transform_1, window_bounds = array<i64: 1, 1, 128, 128>}, {transform_indices = @transform_2, window_bounds = array<i64: 1, 16, 3>}, {transform_indices = @transform_3, window_bounds = array<i64: 1, 16, 8>}, {pipeline_mode = #tpu.pipeline_mode<synchronous>, transform_indices = @transform_4, window_bounds = array<i64: 8, 128>}, {pipeline_mode = #tpu.pipeline_mode<synchronous>, transform_indices = @transform_5, window_bounds = array<i64: 1, 128>}, {pipeline_mode = #tpu.pipeline_mode<synchronous>, transform_indices = @transform_6, window_bounds = array<i64: 1, 128>}, {transform_indices = @transform_7, window_bounds = array<i64: 1, 16, 128>}]} {
    %c0 = arith.constant 0 : index
    %c0_0 = arith.constant 0 : index
    %c0_1 = arith.constant 0 : index
    %0 = vector.load %arg5[%c0, %c0_0, %c0_1] : memref<1x16x8xf32, #tpu.memory_space<vmem>>, vector<1x16x8xf32>
    %1 = vector.shape_cast %0 : vector<1x16x8xf32> to vector<16x8xf32>
    %c0_2 = arith.constant 0 : index
    %c0_3 = arith.constant 0 : index
    %2 = vector.load %arg6[%c0_2, %c0_3] : memref<8x128xf32, #tpu.memory_space<vmem>>, vector<8x128xf32>
    %cst = arith.constant dense<0.000000e+00> : vector<16x128xf32>
    %3 = tpu.matmul %1, %2, %cst {dimension_numbers = #tpu.dot_dimension_numbers<[1], [0], [0], [1], [0, 0, 1, 1], [], []>} : vector<16x8xf32>, vector<8x128xf32>, vector<16x128xf32> -> vector<16x128xf32>
    %c0_4 = arith.constant 0 : index
    %c0_5 = arith.constant 0 : index
    %4 = vector.load %arg7[%c0_4, %c0_5] : memref<1x128xf32, #tpu.memory_space<vmem>>, vector<1x128xf32>
    %5 = vector.broadcast %4 : vector<1x128xf32> to vector<16x128xf32>
    %6 = arith.mulf %3, %5 : vector<16x128xf32>
    %c0_6 = arith.constant 0 : index
    %c0_7 = arith.constant 0 : index
    %7 = vector.load %arg8[%c0_6, %c0_7] : memref<1x128xf32, #tpu.memory_space<vmem>>, vector<1x128xf32>
    %8 = vector.broadcast %7 : vector<1x128xf32> to vector<16x128xf32>
    %9 = arith.addf %6, %8 : vector<16x128xf32>
    %cst_8 = arith.constant 0.000000e+00 : f32
    %10 = vector.broadcast %cst_8 : f32 to vector<16x128xf32>
    %11 = arith.maximumf %9, %10 : vector<16x128xf32>
    %c0_9 = arith.constant 0 : index
    %c0_10 = arith.constant 0 : index
    %c0_11 = arith.constant 0 : index
    %12 = vector.load %arg4[%c0_9, %c0_10, %c0_11] : memref<1x16x3xf32, #tpu.memory_space<vmem>>, vector<1x16x3xf32>
    %13 = vector.shape_cast %12 : vector<1x16x3xf32> to vector<16x3xf32>
    %14 = vector.extract_strided_slice %13 {offsets = [0, 0], sizes = [16, 1], strides = [1, 1]} : vector<16x3xf32> to vector<16x1xf32>
    %15 = vector.extract_strided_slice %13 {offsets = [0, 1], sizes = [16, 1], strides = [1, 1]} : vector<16x3xf32> to vector<16x1xf32>
    %16 = vector.extract_strided_slice %13 {offsets = [0, 2], sizes = [16, 1], strides = [1, 1]} : vector<16x3xf32> to vector<16x1xf32>
    %17 = tpu.iota {dimensions = array<i32: 1>} : vector<16x128xi32>
    %18 = arith.sitofp %17 : vector<16x128xi32> to vector<16x128xf32>
    %cst_12 = arith.constant 3.000000e+38 : f32
    %19 = vector.broadcast %cst_12 : f32 to vector<16x1xf32>
    %cst_13 = arith.constant 0.000000e+00 : f32
    %20 = vector.broadcast %cst_13 : f32 to vector<16x1xf32>
    %cst_14 = arith.constant 3.000000e+38 : f32
    %21 = vector.broadcast %cst_14 : f32 to vector<16x1xf32>
    %cst_15 = arith.constant 0.000000e+00 : f32
    %22 = vector.broadcast %cst_15 : f32 to vector<16x1xf32>
    %cst_16 = arith.constant 3.000000e+38 : f32
    %23 = vector.broadcast %cst_16 : f32 to vector<16x1xf32>
    %cst_17 = arith.constant 0.000000e+00 : f32
    %24 = vector.broadcast %cst_17 : f32 to vector<16x1xf32>
    %cst_18 = arith.constant 3.000000e+38 : f32
    %c0_i32 = arith.constant 0 : i32
    %c0_19 = arith.constant 0 : index
    %25 = arith.index_cast %c0_i32 : i32 to index
    %c0_20 = arith.constant 0 : index
    %c0_21 = arith.constant 0 : index
    %26 = vector.load %arg2[%c0_19, %25, %c0_20, %c0_21] : memref<1x1x3x128xf32, #tpu.memory_space<vmem>>, vector<1x1x3x128xf32>
    %27 = vector.shape_cast %26 : vector<1x1x3x128xf32> to vector<3x128xf32>
    %28 = vector.extract_strided_slice %27 {offsets = [0, 0], sizes = [1, 128], strides = [1, 1]} : vector<3x128xf32> to vector<1x128xf32>
    %29 = vector.broadcast %14 : vector<16x1xf32> to vector<16x128xf32>
    %30 = vector.broadcast %28 : vector<1x128xf32> to vector<16x128xf32>
    %31 = arith.subf %29, %30 : vector<16x128xf32>
    %32 = vector.extract_strided_slice %27 {offsets = [1, 0], sizes = [1, 128], strides = [1, 1]} : vector<3x128xf32> to vector<1x128xf32>
    %33 = vector.broadcast %15 : vector<16x1xf32> to vector<16x128xf32>
    %34 = vector.broadcast %32 : vector<1x128xf32> to vector<16x128xf32>
    %35 = arith.subf %33, %34 : vector<16x128xf32>
    %36 = vector.extract_strided_slice %27 {offsets = [2, 0], sizes = [1, 128], strides = [1, 1]} : vector<3x128xf32> to vector<1x128xf32>
    %37 = vector.broadcast %16 : vector<16x1xf32> to vector<16x128xf32>
    %38 = vector.broadcast %36 : vector<1x128xf32> to vector<16x128xf32>
    %39 = arith.subf %37, %38 : vector<16x128xf32>
    %40 = arith.mulf %31, %31 : vector<16x128xf32>
    %41 = arith.mulf %35, %35 : vector<16x128xf32>
    %42 = arith.addf %40, %41 : vector<16x128xf32>
    %43 = arith.mulf %39, %39 : vector<16x128xf32>
    %44 = arith.addf %42, %43 : vector<16x128xf32>
    %c128_i32 = arith.constant 128 : i32
    %45 = arith.muli %c0_i32, %c128_i32 : i32
    %46 = arith.sitofp %45 : i32 to f32
    %cst_22 = arith.constant dense<0x7F800000> : vector<16xf32>
    %47 = vector.multi_reduction <minimumf>, %44, %cst_22 [1] : vector<16x128xf32> to vector<16xf32>
    %48 = vector.shape_cast %47 : vector<16xf32> to vector<16x1xf32>
    %49 = vector.broadcast %48 : vector<16x1xf32> to vector<16x128xf32>
    %50 = arith.cmpf oeq, %44, %49 : vector<16x128xf32>
    %cst_23 = arith.constant 1.280000e+02 : f32
    %51 = vector.broadcast %cst_23 : f32 to vector<16x128xf32>
    %52 = arith.select %50, %18, %51 : vector<16x128xi1>, vector<16x128xf32>
    %cst_24 = arith.constant dense<0x7F800000> : vector<16xf32>
    %53 = vector.multi_reduction <minimumf>, %52, %cst_24 [1] : vector<16x128xf32> to vector<16xf32>
    %54 = vector.shape_cast %53 : vector<16xf32> to vector<16x1xf32>
    %55 = vector.broadcast %54 : vector<16x1xf32> to vector<16x128xf32>
    %56 = arith.cmpf oeq, %18, %55 : vector<16x128xf32>
    %57 = vector.broadcast %cst_18 : f32 to vector<16x128xf32>
    %58 = arith.select %56, %57, %44 : vector<16x128xi1>, vector<16x128xf32>
    %59 = vector.broadcast %46 : f32 to vector<16x1xf32>
    %60 = arith.addf %54, %59 : vector<16x1xf32>
    %61 = arith.cmpf olt, %48, %19 : vector<16x1xf32>
    %62 = arith.cmpf olt, %48, %21 : vector<16x1xf32>
    %63 = arith.cmpf olt, %48, %23 : vector<16x1xf32>
    %64 = arith.select %63, %48, %23 : vector<16x1xi1>, vector<16x1xf32>
    %65 = arith.select %62, %21, %64 : vector<16x1xi1>, vector<16x1xf32>
    %66 = arith.select %63, %60, %24 : vector<16x1xi1>, vector<16x1xf32>
    %67 = arith.select %62, %22, %66 : vector<16x1xi1>, vector<16x1xf32>
    %68 = arith.select %62, %48, %21 : vector<16x1xi1>, vector<16x1xf32>
    %69 = arith.select %61, %19, %68 : vector<16x1xi1>, vector<16x1xf32>
    %70 = arith.select %62, %60, %22 : vector<16x1xi1>, vector<16x1xf32>
    %71 = arith.select %61, %20, %70 : vector<16x1xi1>, vector<16x1xf32>
    %72 = arith.select %61, %48, %19 : vector<16x1xi1>, vector<16x1xf32>
    %73 = arith.select %61, %60, %20 : vector<16x1xi1>, vector<16x1xf32>
    %cst_25 = arith.constant dense<0x7F800000> : vector<16xf32>
    %74 = vector.multi_reduction <minimumf>, %58, %cst_25 [1] : vector<16x128xf32> to vector<16xf32>
    %75 = vector.shape_cast %74 : vector<16xf32> to vector<16x1xf32>
    %76 = vector.broadcast %75 : vector<16x1xf32> to vector<16x128xf32>
    %77 = arith.cmpf oeq, %58, %76 : vector<16x128xf32>
    %cst_26 = arith.constant 1.280000e+02 : f32
    %78 = vector.broadcast %cst_26 : f32 to vector<16x128xf32>
    %79 = arith.select %77, %18, %78 : vector<16x128xi1>, vector<16x128xf32>
    %cst_27 = arith.constant dense<0x7F800000> : vector<16xf32>
    %80 = vector.multi_reduction <minimumf>, %79, %cst_27 [1] : vector<16x128xf32> to vector<16xf32>
    %81 = vector.shape_cast %80 : vector<16xf32> to vector<16x1xf32>
    %82 = vector.broadcast %81 : vector<16x1xf32> to vector<16x128xf32>
    %83 = arith.cmpf oeq, %18, %82 : vector<16x128xf32>
    %84 = vector.broadcast %cst_18 : f32 to vector<16x128xf32>
    %85 = arith.select %83, %84, %58 : vector<16x128xi1>, vector<16x128xf32>
    %86 = vector.broadcast %46 : f32 to vector<16x1xf32>
    %87 = arith.addf %81, %86 : vector<16x1xf32>
    %88 = arith.cmpf olt, %75, %72 : vector<16x1xf32>
    %89 = arith.cmpf olt, %75, %69 : vector<16x1xf32>
    %90 = arith.cmpf olt, %75, %65 : vector<16x1xf32>
    %91 = arith.select %90, %75, %65 : vector<16x1xi1>, vector<16x1xf32>
    %92 = arith.select %89, %69, %91 : vector<16x1xi1>, vector<16x1xf32>
    %93 = arith.select %90, %87, %67 : vector<16x1xi1>, vector<16x1xf32>
    %94 = arith.select %89, %71, %93 : vector<16x1xi1>, vector<16x1xf32>
    %95 = arith.select %89, %75, %69 : vector<16x1xi1>, vector<16x1xf32>
    %96 = arith.select %88, %72, %95 : vector<16x1xi1>, vector<16x1xf32>
    %97 = arith.select %89, %87, %71 : vector<16x1xi1>, vector<16x1xf32>
    %98 = arith.select %88, %73, %97 : vector<16x1xi1>, vector<16x1xf32>
    %99 = arith.select %88, %75, %72 : vector<16x1xi1>, vector<16x1xf32>
    %100 = arith.select %88, %87, %73 : vector<16x1xi1>, vector<16x1xf32>
    %cst_28 = arith.constant dense<0x7F800000> : vector<16xf32>
    %101 = vector.multi_reduction <minimumf>, %85, %cst_28 [1] : vector<16x128xf32> to vector<16xf32>
    %102 = vector.shape_cast %101 : vector<16xf32> to vector<16x1xf32>
    %103 = vector.broadcast %102 : vector<16x1xf32> to vector<16x128xf32>
    %104 = arith.cmpf oeq, %85, %103 : vector<16x128xf32>
    %cst_29 = arith.constant 1.280000e+02 : f32
    %105 = vector.broadcast %cst_29 : f32 to vector<16x128xf32>
    %106 = arith.select %104, %18, %105 : vector<16x128xi1>, vector<16x128xf32>
    %cst_30 = arith.constant dense<0x7F800000> : vector<16xf32>
    %107 = vector.multi_reduction <minimumf>, %106, %cst_30 [1] : vector<16x128xf32> to vector<16xf32>
    %108 = vector.shape_cast %107 : vector<16xf32> to vector<16x1xf32>
    %109 = vector.broadcast %46 : f32 to vector<16x1xf32>
    %110 = arith.addf %108, %109 : vector<16x1xf32>
    %111 = arith.cmpf olt, %102, %99 : vector<16x1xf32>
    %112 = arith.cmpf olt, %102, %96 : vector<16x1xf32>
    %113 = arith.cmpf olt, %102, %92 : vector<16x1xf32>
    %114 = arith.select %113, %102, %92 : vector<16x1xi1>, vector<16x1xf32>
    %115 = arith.select %112, %96, %114 : vector<16x1xi1>, vector<16x1xf32>
    %116 = arith.select %113, %110, %94 : vector<16x1xi1>, vector<16x1xf32>
    %117 = arith.select %112, %98, %116 : vector<16x1xi1>, vector<16x1xf32>
    %118 = arith.select %112, %102, %96 : vector<16x1xi1>, vector<16x1xf32>
    %119 = arith.select %111, %99, %118 : vector<16x1xi1>, vector<16x1xf32>
    %120 = arith.select %112, %110, %98 : vector<16x1xi1>, vector<16x1xf32>
    %121 = arith.select %111, %100, %120 : vector<16x1xi1>, vector<16x1xf32>
    %122 = arith.select %111, %102, %99 : vector<16x1xi1>, vector<16x1xf32>
    %123 = arith.select %111, %110, %100 : vector<16x1xi1>, vector<16x1xf32>
    %c1_i32 = arith.constant 1 : i32
    %cst_31 = arith.constant 9.99999993E-9 : f32
    %124 = vector.broadcast %cst_31 : f32 to vector<16x1xf32>
    %125 = arith.addf %122, %124 : vector<16x1xf32>
    %126 = tpu.reciprocal %125 : vector<16x1xf32> -> vector<16x1xf32>
    %cst_32 = arith.constant 9.99999993E-9 : f32
    %127 = vector.broadcast %cst_32 : f32 to vector<16x1xf32>
    %128 = arith.addf %119, %127 : vector<16x1xf32>
    %129 = tpu.reciprocal %128 : vector<16x1xf32> -> vector<16x1xf32>
    %cst_33 = arith.constant 9.99999993E-9 : f32
    %130 = vector.broadcast %cst_33 : f32 to vector<16x1xf32>
    %131 = arith.addf %115, %130 : vector<16x1xf32>
    %132 = tpu.reciprocal %131 : vector<16x1xf32> -> vector<16x1xf32>
    %133 = arith.addf %126, %129 : vector<16x1xf32>
    %134 = arith.addf %133, %132 : vector<16x1xf32>
    %135 = tpu.reciprocal %134 : vector<16x1xf32> -> vector<16x1xf32>
    %cst_34 = arith.constant 0.000000e+00 : f32
    %136 = vector.broadcast %cst_34 : f32 to vector<16x128xf32>
    %c0_i32_35 = arith.constant 0 : i32
    %c128_i32_36 = arith.constant 128 : i32
    %137 = arith.muli %c0_i32_35, %c128_i32_36 : i32
    %138 = arith.sitofp %137 : i32 to f32
    %139 = vector.broadcast %138 : f32 to vector<16x128xf32>
    %140 = arith.addf %18, %139 : vector<16x128xf32>
    %141 = vector.broadcast %123 : vector<16x1xf32> to vector<16x128xf32>
    %142 = arith.cmpf oeq, %140, %141 : vector<16x128xf32>
    %cst_37 = arith.constant 0.000000e+00 : f32
    %143 = vector.shape_cast %126 : vector<16x1xf32> to vector<16x1xf32>
    %144 = vector.broadcast %143 : vector<16x1xf32> to vector<16x128xf32>
    %145 = vector.broadcast %cst_37 : f32 to vector<16x128xf32>
    %146 = arith.select %142, %144, %145 : vector<16x128xi1>, vector<16x128xf32>
    %147 = vector.broadcast %121 : vector<16x1xf32> to vector<16x128xf32>
    %148 = arith.cmpf oeq, %140, %147 : vector<16x128xf32>
    %149 = vector.shape_cast %129 : vector<16x1xf32> to vector<16x1xf32>
    %150 = vector.broadcast %149 : vector<16x1xf32> to vector<16x128xf32>
    %151 = arith.select %148, %150, %146 : vector<16x128xi1>, vector<16x128xf32>
    %152 = vector.broadcast %117 : vector<16x1xf32> to vector<16x128xf32>
    %153 = arith.cmpf oeq, %140, %152 : vector<16x128xf32>
    %154 = vector.shape_cast %132 : vector<16x1xf32> to vector<16x1xf32>
    %155 = vector.broadcast %154 : vector<16x1xf32> to vector<16x128xf32>
    %156 = arith.select %153, %155, %151 : vector<16x128xi1>, vector<16x128xf32>
    %c0_38 = arith.constant 0 : index
    %157 = arith.index_cast %c0_i32_35 : i32 to index
    %c0_39 = arith.constant 0 : index
    %c0_40 = arith.constant 0 : index
    %158 = vector.load %arg3[%c0_38, %157, %c0_39, %c0_40] : memref<1x1x128x128xf32, #tpu.memory_space<vmem>>, vector<1x1x128x128xf32>
    %159 = vector.shape_cast %158 : vector<1x1x128x128xf32> to vector<128x128xf32>
    %cst_41 = arith.constant dense<0.000000e+00> : vector<16x128xf32>
    %160 = tpu.matmul %156, %159, %cst_41 {dimension_numbers = #tpu.dot_dimension_numbers<[1], [0], [0], [1], [0, 0, 1, 1], [], []>} : vector<16x128xf32>, vector<128x128xf32>, vector<16x128xf32> -> vector<16x128xf32>
    %161 = arith.addf %136, %160 : vector<16x128xf32>
    %c1_i32_42 = arith.constant 1 : i32
    %162 = vector.broadcast %135 : vector<16x1xf32> to vector<16x128xf32>
    %163 = arith.mulf %161, %162 : vector<16x128xf32>
    %164 = arith.addf %163, %11 : vector<16x128xf32>
    %c0_43 = arith.constant 0 : index
    %c0_44 = arith.constant 0 : index
    %c0_45 = arith.constant 0 : index
    %165 = vector.load %arg9[%c0_43, %c0_44, %c0_45] : memref<1x16x128xf32, #tpu.memory_space<vmem>>, vector<1x16x128xf32>
    %166 = vector.shape_cast %165 : vector<1x16x128xf32> to vector<16x128xf32>
    %167 = vector.shape_cast %164 : vector<16x128xf32> to vector<1x16x128xf32>
    tpu.vector_store %arg9[%c0_43, %c0_44, %c0_45], %167 {strides = array<i32>} : memref<1x16x128xf32, #tpu.memory_space<vmem>>, vector<1x16x128xf32>,
    return
  }
  func.func @transform_0(%arg0: i32, %arg1: i32) -> (i32, i32, i32, i32) {
    %c0_i32 = arith.constant 0 : i32
    %c0_i32_0 = arith.constant 0 : i32
    %c0_i32_1 = arith.constant 0 : i32
    %c0_i32_2 = arith.constant 0 : i32
    return %arg0, %c0_i32, %c0_i32_0, %c0_i32_1 : i32, i32, i32, i32
  }
  func.func @transform_1(%arg0: i32, %arg1: i32) -> (i32, i32, i32, i32) {
    %c0_i32 = arith.constant 0 : i32
    %c0_i32_0 = arith.constant 0 : i32
    %c0_i32_1 = arith.constant 0 : i32
    %c0_i32_2 = arith.constant 0 : i32
    return %arg0, %c0_i32, %c0_i32_0, %c0_i32_1 : i32, i32, i32, i32
  }
  func.func @transform_2(%arg0: i32, %arg1: i32) -> (i32, i32, i32) {
    %c0_i32 = arith.constant 0 : i32
    %c0_i32_0 = arith.constant 0 : i32
    return %arg0, %arg1, %c0_i32 : i32, i32, i32
  }
  func.func @transform_3(%arg0: i32, %arg1: i32) -> (i32, i32, i32) {
    %c0_i32 = arith.constant 0 : i32
    %c0_i32_0 = arith.constant 0 : i32
    return %arg0, %arg1, %c0_i32 : i32, i32, i32
  }
  func.func @transform_4(%arg0: i32, %arg1: i32) -> (i32, i32) {
    %c0_i32 = arith.constant 0 : i32
    %c0_i32_0 = arith.constant 0 : i32
    %c0_i32_1 = arith.constant 0 : i32
    return %c0_i32, %c0_i32_0 : i32, i32
  }
  func.func @transform_5(%arg0: i32, %arg1: i32) -> (i32, i32) {
    %c0_i32 = arith.constant 0 : i32
    %c0_i32_0 = arith.constant 0 : i32
    %c0_i32_1 = arith.constant 0 : i32
    return %c0_i32, %c0_i32_0 : i32, i32
  }
  func.func @transform_6(%arg0: i32, %arg1: i32) -> (i32, i32) {
    %c0_i32 = arith.constant 0 : i32
    %c0_i32_0 = arith.constant 0 : i32
    %c0_i32_1 = arith.constant 0 : i32
    return %c0_i32, %c0_i32_0 : i32, i32
  }
  func.func @transform_7(%arg0: i32, %arg1: i32) -> (i32, i32, i32) {
    %c0_i32 = arith.constant 0 : i32
    %c0_i32_0 = arith.constant 0 : i32
    return %arg0, %arg1, %c0_i32 : i32, i32, i32
  }
}

</mosaic_0001>

<llo_original>
// kernel: transition_up.2
$region0: #{transition_up.2}
  #allocation0 [shape = 'u32[]', space=smem, size = 0x4, offset = 0x4, fixed_abs, tag = 'smem constant byte address 0x4 - core index']
  #allocation1 [shape = 'u32[72,128]{1,0:T(1,128)}', space=vmem, size = 0x9000, scoped, tag = 'internal scratch']
  %s0 = inlined_call_operand.vmem [shape: f32[2,128,16], index: 0, kind: input, shape index: {}]
  %s1 = inlined_call_operand.vmem [shape: f32[16,128], index: 1, kind: input, shape index: {}]
  %s2 = inlined_call_operand.vmem [shape: f32[1,128], index: 2, kind: input, shape index: {}]
  %s3 = inlined_call_operand.vmem [shape: f32[1,128], index: 3, kind: input, shape index: {}]
  %s4 = inlined_call_operand.vmem [shape: f32[2,1,128,128], index: 4, kind: output, shape index: {}]
  %s5 = sld [smem:[#allocation0]]
  $region49: #{transition_up.2} parent=0
    _
  %s7 = ssub.s32 1, %s5
  %s8 = scalar_select 0, %s7, %s5
  loop: start=0, step=1, limit=4
  $region2: #{transition_up.2} parent=0 // loop_pre_header
    _
  $region3: #{transition_up.2} parent=0 // loop_header
    %s10 = sphi 0, %s14
    %p11 = scmp.ge.s32.totalorder %s10, 4
    %s17 = sphi 0, %s29
    %s18 = sphi 0, %s25
    %s19 = sphi 0, %s17
    %s20 = sphi 0, %s18
    %s21 = sphi 0, %s19
    %s22 = sphi 0, %s20
    %s34 = sphi 0, %s36
    %s37 = sphi 0, %s34
    %s38 = sphi 0, %s37
    %s54 = sphi 0, %s38
    %s58 = sphi 0, %s58
    %s60 = sphi 0, %s58
    %s61 = sphi 0, %s60
    %s75 = sphi 0, %s61
    %s79 = sphi 0, %s79
    %s81 = sphi 0, %s79
    %s82 = sphi 0, %s81
    %s96 = sphi 0, %s82
    %s100 = sphi 0, %s100
    %s102 = sphi 0, %s100
    %s103 = sphi 0, %s102
    %s117 = sphi 0, %s103
    %s125 = sphi 0, %s127
    %s128 = sphi 0, %s125
    %s129 = sphi 0, %s128
    %s145 = sphi 0, %s129
  $region4: #{transition_up.2} parent=0 // loop_header_branch
    %13 = sbr.rel (%p11) target = $region8
  $region5: #{transition_up.2} parent=0 // loop_body
    %s15 = ssub.s32 %s10, 1
    %s16 = ssub.s32 %s10, 2
    %s23 = sadd.s32 1, %s18
    %p24 = scmp.ge.s32.totalorder %s23, 1
    %s25 = scalar_select %p24, 0, %s23
    %s26 = sadd.s32 1, %s17
    %s27 = scalar_select %p24, %s26, %s17
    %p28 = scmp.ge.s32.totalorder %s27, 2
    %s29 = scalar_select %p28, 0, %s27
    %s30 = ssub.s32 %s17, %s29
    %s31 = ssub.s32 %s18, %s25
    %s32 = sor.u32 %s30, %s31
    %p33 = scmp.eq.s32.totalorder %s32, 0
    %s35 = sadd.s32 %s34, 1
    %s36 = scalar_select %p33, %s34, %s35
    %p39 = pneg %p33
    %p40 = scmp.eq.s32.totalorder %s10, 1
    %p41 = por %p39, %p40
    %p42 = scmp.ne.s32.totalorder %s34, %s37
    %p43 = scmp.eq.s32.totalorder %s10, 0
    %p44 = por %p42, %p43
    %p45 = scmp.ne.s32.totalorder %s34, %s37
    %p46 = scmp.eq.s32.totalorder %s15, 1
    %p47 = por %p45, %p46
    %p48 = scmp.ne.s32.totalorder %s37, %s38
    %p49 = scmp.eq.s32.totalorder %s15, 0
    %p50 = por %p48, %p49
    %p51 = scmp.ne.s32.totalorder %s37, %s38
    %p52 = scmp.eq.s32.totalorder %s16, 1
    %p53 = por %p51, %p52
    %p55 = scmp.ne.s32.totalorder %s38, %s54
    %p56 = scmp.eq.s32.totalorder %s16, 0
    %p57 = por %p55, %p56
    %s59 = sadd.s32 %s58, 1
    %p62 = scmp.eq.s32.totalorder %s10, 1
    %p63 = scmp.ne.s32.totalorder %s58, %s60
    %p64 = scmp.eq.s32.totalorder %s10, 0
    %p65 = por %p63, %p64
    %p66 = scmp.ne.s32.totalorder %s58, %s60
    %p67 = scmp.eq.s32.totalorder %s15, 1
    %p68 = por %p66, %p67
    %p69 = scmp.ne.s32.totalorder %s60, %s61
    %p70 = scmp.eq.s32.totalorder %s15, 0
    %p71 = por %p69, %p70
    %p72 = scmp.ne.s32.totalorder %s60, %s61
    %p73 = scmp.eq.s32.totalorder %s16, 1
    %p74 = por %p72, %p73
    %p76 = scmp.ne.s32.totalorder %s61, %s75
    %p77 = scmp.eq.s32.totalorder %s16, 0
    %p78 = por %p76, %p77
    %s80 = sadd.s32 %s79, 1
    %p83 = scmp.eq.s32.totalorder %s10, 1
    %p84 = scmp.ne.s32.totalorder %s79, %s81
    %p85 = scmp.eq.s32.totalorder %s10, 0
    %p86 = por %p84, %p85
    %p87 = scmp.ne.s32.totalorder %s79, %s81
    %p88 = scmp.eq.s32.totalorder %s15, 1
    %p89 = por %p87, %p88
    %p90 = scmp.ne.s32.totalorder %s81, %s82
    %p91 = scmp.eq.s32.totalorder %s15, 0
    %p92 = por %p90, %p91
    %p93 = scmp.ne.s32.totalorder %s81, %s82
    %p94 = scmp.eq.s32.totalorder %s16, 1
    %p95 = por %p93, %p94
    %p97 = scmp.ne.s32.totalorder %s82, %s96
    %p98 = scmp.eq.s32.totalorder %s16, 0
    %p99 = por %p97, %p98
    %s101 = sadd.s32 %s100, 1
    %p104 = scmp.eq.s32.totalorder %s10, 1
    %p105 = scmp.ne.s32.totalorder %s100, %s102
    %p106 = scmp.eq.s32.totalorder %s10, 0
    %p107 = por %p105, %p106
    %p108 = scmp.ne.s32.totalorder %s100, %s102
    %p109 = scmp.eq.s32.totalorder %s15, 1
    %p110 = por %p108, %p109
    %p111 = scmp.ne.s32.totalorder %s102, %s103
    %p112 = scmp.eq.s32.totalorder %s15, 0
    %p113 = por %p111, %p112
    %p114 = scmp.ne.s32.totalorder %s102, %s103
    %p115 = scmp.eq.s32.totalorder %s16, 1
    %p116 = por %p114, %p115
    %p118 = scmp.ne.s32.totalorder %s103, %s117
    %p119 = scmp.eq.s32.totalorder %s16, 0
    %p120 = por %p118, %p119
    %s121 = ssub.s32 %s17, %s29
    %s122 = ssub.s32 %s18, %s25
    %s123 = sor.u32 %s121, %s122
    %p124 = scmp.eq.s32.totalorder %s123, 0
    %s126 = sadd.s32 %s125, 1
    %s127 = scalar_select %p124, %s125, %s126
    %p130 = pneg %p124
    %p131 = scmp.eq.s32.totalorder %s10, 1
    %p132 = por %p130, %p131
    %p133 = scmp.ne.s32.totalorder %s125, %s128
    %p134 = scmp.eq.s32.totalorder %s10, 0
    %p135 = por %p133, %p134
    %p136 = scmp.ne.s32.totalorder %s125, %s128
    %p137 = scmp.eq.s32.totalorder %s15, 1
    %p138 = por %p136, %p137
    %p139 = scmp.ne.s32.totalorder %s128, %s129
    %p140 = scmp.eq.s32.totalorder %s15, 0
    %p141 = por %p139, %p140
    %p142 = scmp.ne.s32.totalorder %s128, %s129
    %p143 = scmp.eq.s32.totalorder %s16, 1
    %p144 = por %p142, %p143
    %p146 = scmp.ne.s32.totalorder %s129, %s145
    %p147 = scmp.eq.s32.totalorder %s16, 0
    %p148 = por %p146, %p147
    %p149 = scmp.le.s32.totalorder 1, %s10
    %p150 = scmp.lt.s32.totalorder %s10, 3
    %p151 = pnand %p149, %p150
    %p152 = pneg %p151
    // Predicated region
    $region9: #{transition_up.2} parent=5 // pred_check
      _
    $region10: #{transition_up.2} parent=5 // pred_check_branch
      %154 = sbr.rel (%p151) target = $region12
    $region11: #{transition_up.2} parent=5 // pred_region
      %s155 = ssub.s32 %s10, 1
      // Predicated region
      $region13: #{transition_up.2} parent=11 // pred_check
        %p156 = pneg %p71
      $region14: #{transition_up.2} parent=11 // pred_check_branch
        %158 = sbr.rel (%p156) target = $region16
      $region15: #{transition_up.2} parent=11 // pred_region
        _
      $region16: #{transition_up.2} parent=11 // pred_fallthru
        _
      // Predicated region
      $region17: #{transition_up.2} parent=11 // pred_check
        %p159 = pneg %p92
      $region18: #{transition_up.2} parent=11 // pred_check_branch
        %161 = sbr.rel (%p159) target = $region20
      $region19: #{transition_up.2} parent=11 // pred_region
        _
      $region20: #{transition_up.2} parent=11 // pred_fallthru
        _
      // Predicated region
      $region21: #{transition_up.2} parent=11 // pred_check
        %p162 = pneg %p113
      $region22: #{transition_up.2} parent=11 // pred_check_branch
        %164 = sbr.rel (%p162) target = $region24
      $region23: #{transition_up.2} parent=11 // pred_region
        _
      $region24: #{transition_up.2} parent=11 // pred_fallthru
        _
    $region12: #{transition_up.2} parent=5 // pred_fallthru
      _
    %p165 = scmp.lt.s32.totalorder %s10, 2
    // Predicated region
    $region25: #{transition_up.2} parent=5 // pred_check
      %p166 = pneg %p165
    $region26: #{transition_up.2} parent=5 // pred_check_branch
      %168 = sbr.rel (%p166) target = $region28
    $region27: #{transition_up.2} parent=5 // pred_region
      // Predicated region
      $region29: #{transition_up.2} parent=27 // pred_check
        %p169 = pneg %p44
      $region30: #{transition_up.2} parent=27 // pred_check_branch
        %171 = sbr.rel (%p169) target = $region32
      $region31: #{transition_up.2} parent=27 // pred_region
        %s172 = smul.u32 16, %s18
        %p173 = scmp.lt.s32.totalorder %s17, 1
        %s174 = scalar_select %p173, %s17, 1
        %p175 = scmp.lt.s32.totalorder %s172, 15
        %s176 = scalar_select %p175, %s172, 15
        %s177 = smul.addr %s174, 16
        %s178 = sadd.s32 %s176, %s177
        %s179 = smul.addr %s178, 8
        %s180 = scalar_lea.vmem %s0, %s179
        %s181 = smul.u32 16, %s18
      $region32: #{transition_up.2} parent=27 // pred_fallthru
        _
    $region28: #{transition_up.2} parent=5 // pred_fallthru
      _
    %p182 = scmp.le.s32.totalorder 1, %s10
    %p183 = scmp.lt.s32.totalorder %s10, 3
    %p184 = pnand %p182, %p183
    %p185 = pneg %p184
    // Predicated region
    $region33: #{transition_up.2} parent=5 // pred_check
      _
    $region34: #{transition_up.2} parent=5 // pred_check_branch
      %187 = sbr.rel (%p184) target = $region36
    $region35: #{transition_up.2} parent=5 // pred_region
      %s188 = ssub.s32 %s10, 1
      %s189 = smul.u32 16, %s20
      %p190 = scmp.lt.s32.totalorder %s19, 1
      %s191 = scalar_select %p190, %s19, 1
      %p192 = scmp.lt.s32.totalorder %s189, 15
      %s193 = scalar_select %p192, %s189, 15
      %s194 = smul.addr %s191, 16
      %s195 = sadd.s32 %s193, %s194
      %s196 = smul.addr %s195, 8
      %s197 = scalar_lea.vmem %s0, %s196
      %p198 = pneg %p50
      %p199 = pneg %p47
      %p200 = pneg %p71
      %p201 = pneg %p68
      %p202 = pneg %p92
      %p203 = pneg %p89
      %p204 = pneg %p113
      %p205 = pneg %p110
      %p206 = pneg %p141
      %p207 = pneg %p138
      %p208 = scmp.lt.s32.totalorder %s19, 1
      %s209 = scalar_select %p208, %s19, 1
      %p210 = scmp.lt.s32.totalorder %s20, 0
      %s211 = scalar_select %p210, %s20, 0
      %s212 = smul.addr %s211, 16
      %s213 = smul.addr %s209, 16
      %s214 = sadd.s32 %s212, %s213
      %s215 = smul.addr %s214, 8
      %s216 = scalar_lea.vmem %s4, %s215
      %s217 = smul.u32 16, %s20
      %p218 = scmp.lt.s32.totalorder %s19, 1
      %s219 = scalar_select %p218, %s19, 1
      %p220 = scmp.lt.s32.totalorder %s217, 15
      %s221 = scalar_select %p220, %s217, 15
      %s222 = smul.addr %s219, 16
      %s223 = sadd.s32 %s221, %s222
      %s224 = smul.addr %s223, 8
      %s225 = scalar_lea.vmem %s0, %s224
      %s226 = smul.u32 16, %s20
      %p227 = scmp.lt.s32.totalorder %s19, 1
      %s228 = scalar_select %p227, %s19, 1
      %p229 = scmp.lt.s32.totalorder %s20, 0
      %s230 = scalar_select %p229, %s20, 0
      %s231 = smul.addr %s230, 16
      %s232 = smul.addr %s228, 16
      %s233 = sadd.s32 %s231, %s232
      %s234 = smul.addr %s233, 8
      %s235 = scalar_lea.vmem %s4, %s234
      %v236 = vld [vmem:[%s225] sm:$0xff]
      %v237 = vld [vmem:[%s225 + $0x8] sm:$0xff]
      %v238 = vld [vmem:[%s225 + $0x10] sm:$0xff]
      %v239 = vld [vmem:[%s225 + $0x18] sm:$0xff]
      %v240 = vld [vmem:[%s225 + $0x20] sm:$0xff]
      %v241 = vld [vmem:[%s225 + $0x28] sm:$0xff]
      %v242 = vld [vmem:[%s225 + $0x30] sm:$0xff]
      %v243 = vld [vmem:[%s225 + $0x38] sm:$0xff]
      %v244 = vld [vmem:[%s225 + $0x40] sm:$0xff]
      %v245 = vld [vmem:[%s225 + $0x48] sm:$0xff]
      %v246 = vld [vmem:[%s225 + $0x50] sm:$0xff]
      %v247 = vld [vmem:[%s225 + $0x58] sm:$0xff]
      %v248 = vld [vmem:[%s225 + $0x60] sm:$0xff]
      %v249 = vld [vmem:[%s225 + $0x68] sm:$0xff]
      %v250 = vld [vmem:[%s225 + $0x70] sm:$0xff]
      %v251 = vld [vmem:[%s225 + $0x78] sm:$0xff]
      %v252 = vld [vmem:[%s1] sm:$0xff]
      %v253 = vld [vmem:[%s1 + $0x8] sm:$0xff]
      %vm254 = vcmask 130048
      %v256 = vsel %vm254, %v236, 0
      %v259 = vsel %vm254, %v237, 0
      %v262 = vsel %vm254, %v238, 0
      %v265 = vsel %vm254, %v239, 0
      %v268 = vsel %vm254, %v240, 0
      %v271 = vsel %vm254, %v241, 0
      %v274 = vsel %vm254, %v242, 0
      %v277 = vsel %vm254, %v243, 0
      %v280 = vsel %vm254, %v244, 0
      %v283 = vsel %vm254, %v245, 0
      %v286 = vsel %vm254, %v246, 0
      %v289 = vsel %vm254, %v247, 0
      %v292 = vsel %vm254, %v248, 0
      %v295 = vsel %vm254, %v249, 0
      %v298 = vsel %vm254, %v250, 0
      %v301 = vsel %vm254, %v251, 0
      %303 = vmatpush.msra.mxu0 0.0
      %304 = vmatpush.msra.mxu0 0.0
      %305 = vmatpush.msra.mxu0 0.0
      %306 = vmatpush.msra.mxu0 0.0
      %307 = vmatpush.msra.mxu0 0.0
      %308 = vmatpush.msra.mxu0 0.0
      %309 = vmatpush.msra.mxu0 0.0
      %310 = vmatpush.msra.mxu0 0.0
      %311 = vmatpush.msra.mxu0 0.0
      %312 = vmatpush.msra.mxu0 0.0
      %313 = vmatpush.msra.mxu0 0.0
      %314 = vmatpush.msra.mxu0 0.0
      %315 = vmatpush.msra.mxu0 0.0
      %316 = vmatpush.msra.mxu0 0.0
      %317 = vmatpush.msra.mxu0 %v253
      %318 = vmatpush.msra.mxu0 %v252
      %319 = vmatmul.f32.gmra.mxu0 %v256
      %v320 = vpop.f32.mrf.mxu0
      %v321 = vadd.f32 0.0, %v320
      %322 = vmatmul.f32.gmra.mxu0 %v259
      %v323 = vpop.f32.mrf.mxu0
      %v324 = vadd.f32 0.0, %v323
      %325 = vmatmul.f32.gmra.mxu0 %v262
      %v326 = vpop.f32.mrf.mxu0
      %v327 = vadd.f32 0.0, %v326
      %328 = vmatmul.f32.gmra.mxu0 %v265
      %v329 = vpop.f32.mrf.mxu0
      %v330 = vadd.f32 0.0, %v329
      %331 = vmatmul.f32.gmra.mxu0 %v268
      %v332 = vpop.f32.mrf.mxu0
      %v333 = vadd.f32 0.0, %v332
      %334 = vmatmul.f32.gmra.mxu0 %v271
      %v335 = vpop.f32.mrf.mxu0
      %v336 = vadd.f32 0.0, %v335
      %337 = vmatmul.f32.gmra.mxu0 %v274
      %v338 = vpop.f32.mrf.mxu0
      %v339 = vadd.f32 0.0, %v338
      %340 = vmatmul.f32.gmra.mxu0 %v277
      %v341 = vpop.f32.mrf.mxu0
      %v342 = vadd.f32 0.0, %v341
      %343 = vmatmul.f32.gmra.mxu0 %v280
      %v344 = vpop.f32.mrf.mxu0
      %v345 = vadd.f32 0.0, %v344
      %346 = vmatmul.f32.gmra.mxu0 %v283
      %v347 = vpop.f32.mrf.mxu0
      %v348 = vadd.f32 0.0, %v347
      %349 = vmatmul.f32.gmra.mxu0 %v286
      %v350 = vpop.f32.mrf.mxu0
      %v351 = vadd.f32 0.0, %v350
      %352 = vmatmul.f32.gmra.mxu0 %v289
      %v353 = vpop.f32.mrf.mxu0
      %v354 = vadd.f32 0.0, %v353
      %355 = vmatmul.f32.gmra.mxu0 %v292
      %v356 = vpop.f32.mrf.mxu0
      %v357 = vadd.f32 0.0, %v356
      %358 = vmatmul.f32.gmra.mxu0 %v295
      %v359 = vpop.f32.mrf.mxu0
      %v360 = vadd.f32 0.0, %v359
      %361 = vmatmul.f32.gmra.mxu0 %v298
      %v362 = vpop.f32.mrf.mxu0
      %v363 = vadd.f32 0.0, %v362
      %364 = vmatmul.f32.gmra.mxu0 %v301
      %v365 = vpop.f32.mrf.mxu0
      %v366 = vadd.f32 0.0, %v365
      %367 = vdwg.mxu0
      %v368 = vld [vmem:[%s2] sm:$0x1]
      %v370 = vperm.slane %v368, 0
      %v372 = vmul.f32 %v321, %v370
      %v373 = vmul.f32 %v324, %v370
      %v374 = vmul.f32 %v327, %v370
      %v375 = vmul.f32 %v330, %v370
      %v376 = vmul.f32 %v333, %v370
      %v377 = vmul.f32 %v336, %v370
      %v378 = vmul.f32 %v339, %v370
      %v379 = vmul.f32 %v342, %v370
      %v380 = vmul.f32 %v345, %v370
      %v381 = vmul.f32 %v348, %v370
      %v382 = vmul.f32 %v351, %v370
      %v383 = vmul.f32 %v354, %v370
      %v384 = vmul.f32 %v357, %v370
      %v385 = vmul.f32 %v360, %v370
      %v386 = vmul.f32 %v363, %v370
      %v387 = vmul.f32 %v366, %v370
      %v388 = vld [vmem:[%s3] sm:$0x1]
      %v390 = vperm.slane %v388, 0
      %v392 = vadd.f32 %v372, %v390
      %v393 = vadd.f32 %v373, %v390
      %v394 = vadd.f32 %v374, %v390
      %v395 = vadd.f32 %v375, %v390
      %v396 = vadd.f32 %v376, %v390
      %v397 = vadd.f32 %v377, %v390
      %v398 = vadd.f32 %v378, %v390
      %v399 = vadd.f32 %v379, %v390
      %v400 = vadd.f32 %v380, %v390
      %v401 = vadd.f32 %v381, %v390
      %v402 = vadd.f32 %v382, %v390
      %v403 = vadd.f32 %v383, %v390
      %v404 = vadd.f32 %v384, %v390
      %v405 = vadd.f32 %v385, %v390
      %v406 = vadd.f32 %v386, %v390
      %v407 = vadd.f32 %v387, %v390
      %v408 = vmax.f32 %v392, 0.0
      %v409 = vmax.f32 %v393, 0.0
      %v410 = vmax.f32 %v394, 0.0
      %v411 = vmax.f32 %v395, 0.0
      %v412 = vmax.f32 %v396, 0.0
      %v413 = vmax.f32 %v397, 0.0
      %v414 = vmax.f32 %v398, 0.0
      %v415 = vmax.f32 %v399, 0.0
      %v416 = vmax.f32 %v400, 0.0
      %v417 = vmax.f32 %v401, 0.0
      %v418 = vmax.f32 %v402, 0.0
      %v419 = vmax.f32 %v403, 0.0
      %v420 = vmax.f32 %v404, 0.0
      %v421 = vmax.f32 %v405, 0.0
      %v422 = vmax.f32 %v406, 0.0
      %v423 = vmax.f32 %v407, 0.0
      %424 = vst [vmem:[%s235] sm:$0xff] %v408
      %425 = vst [vmem:[%s235 + $0x8] sm:$0xff] %v409
      %426 = vst [vmem:[%s235 + $0x10] sm:$0xff] %v410
      %427 = vst [vmem:[%s235 + $0x18] sm:$0xff] %v411
      %428 = vst [vmem:[%s235 + $0x20] sm:$0xff] %v412
      %429 = vst [vmem:[%s235 + $0x28] sm:$0xff] %v413
      %430 = vst [vmem:[%s235 + $0x30] sm:$0xff] %v414
      %431 = vst [vmem:[%s235 + $0x38] sm:$0xff] %v415
      %432 = vst [vmem:[%s235 + $0x40] sm:$0xff] %v416
      %433 = vst [vmem:[%s235 + $0x48] sm:$0xff] %v417
      %434 = vst [vmem:[%s235 + $0x50] sm:$0xff] %v418
      %435 = vst [vmem:[%s235 + $0x58] sm:$0xff] %v419
      %436 = vst [vmem:[%s235 + $0x60] sm:$0xff] %v420
      %437 = vst [vmem:[%s235 + $0x68] sm:$0xff] %v421
      %438 = vst [vmem:[%s235 + $0x70] sm:$0xff] %v422
      %439 = vst [vmem:[%s235 + $0x78] sm:$0xff] %v423
      %p440 = scmp.lt.s32.totalorder %s19, 1
      %s441 = scalar_select %p440, %s19, 1
      %p442 = scmp.lt.s32.totalorder %s20, 0
      %s443 = scalar_select %p442, %s20, 0
      %s444 = smul.addr %s443, 16
      %s445 = smul.addr %s441, 16
      %s446 = sadd.s32 %s444, %s445
      %s447 = smul.addr %s446, 8
      %s448 = scalar_lea.vmem %s4, %s447
      // Predicated region
      $region37: #{transition_up.2} parent=35 // pred_check
        %p449 = pneg %p138
      $region38: #{transition_up.2} parent=35 // pred_check_branch
        %451 = sbr.rel (%p449) target = $region40
      $region39: #{transition_up.2} parent=35 // pred_region
        _
      $region40: #{transition_up.2} parent=35 // pred_fallthru
        _
    $region36: #{transition_up.2} parent=5 // pred_fallthru
      _
    %p452 = scmp.le.s32.totalorder 2, %s10
    // Predicated region
    $region41: #{transition_up.2} parent=5 // pred_check
      %p453 = pneg %p452
    $region42: #{transition_up.2} parent=5 // pred_check_branch
      %455 = sbr.rel (%p453) target = $region44
    $region43: #{transition_up.2} parent=5 // pred_region
      %s456 = ssub.s32 %s10, 2
      // Predicated region
      $region45: #{transition_up.2} parent=43 // pred_check
        %p457 = pneg %p144
      $region46: #{transition_up.2} parent=43 // pred_check_branch
        %459 = sbr.rel (%p457) target = $region48
      $region47: #{transition_up.2} parent=43 // pred_region
        %p460 = scmp.lt.s32.totalorder %s21, 1
        %s461 = scalar_select %p460, %s21, 1
        %p462 = scmp.lt.s32.totalorder %s22, 0
        %s463 = scalar_select %p462, %s22, 0
        %s464 = smul.addr %s463, 16
        %s465 = smul.addr %s461, 16
        %s466 = sadd.s32 %s464, %s465
        %s467 = smul.addr %s466, 8
        %s468 = scalar_lea.vmem %s4, %s467
      $region48: #{transition_up.2} parent=43 // pred_fallthru
        _
    $region44: #{transition_up.2} parent=5 // pred_fallthru
      _
  $region6: #{transition_up.2} parent=0 // loop_footer
    %s14 = sadd.s32 1, %s10
  $region7: #{transition_up.2} parent=0 // loop_footer_branch
    %9 = sbr.rel target = $region3
  $region8: #{transition_up.2} parent=0 // loop_exit
    _

// kernel: transition_up.3
$region0: #{transition_up.3}
  #allocation0 [shape = 'u32[]', space=smem, size = 0x4, offset = 0x4, fixed_abs, tag = 'smem constant byte address 0x4 - core index']
  #allocation1 [shape = 'u32[72,128]{1,0:T(1,128)}', space=vmem, size = 0x9000, scoped, tag = 'internal scratch']
  %s0 = inlined_call_operand.vmem [shape: f32[2,1,3,128], index: 0, kind: input, shape index: {}]
  %s1 = inlined_call_operand.vmem [shape: f32[2,1,128,128], index: 1, kind: input, shape index: {}]
  %s2 = inlined_call_operand.vmem [shape: f32[2,16,3], index: 2, kind: input, shape index: {}]
  %s3 = inlined_call_operand.vmem [shape: f32[2,16,8], index: 3, kind: input, shape index: {}]
  %s4 = inlined_call_operand.vmem [shape: f32[8,128], index: 4, kind: input, shape index: {}]
  %s5 = inlined_call_operand.vmem [shape: f32[1,128], index: 5, kind: input, shape index: {}]
  %s6 = inlined_call_operand.vmem [shape: f32[1,128], index: 6, kind: input, shape index: {}]
  %s7 = inlined_call_operand.hbm [shape: f32[2,16,128], index: 7, kind: output, shape index: {}]
  %s8 = sld [smem:[#allocation0]]
  $region61: #{transition_up.3} parent=0
    _
  %s10 = ssub.s32 1, %s8
  %s11 = scalar_select 0, %s10, %s8
  $region1: #{transition_up.3} parent=0
    #allocation2 [shape = 'u8[16384]{0}', space=vmem, size = 0x4000, scoped, tag = 'output window, operand 0']
    #allocation3 [shape = 's32[2]{0}', space=sflag, size = 0x8, scoped, tag = 'scoped memory for transition_up.3']
    %12 = vsyncpa [#allocation3], 0
    %s13 = scalar_lea.sflag [#allocation3], 1
    %14 = vsyncpa %s13, 0
    loop: start=0, step=1, limit=4
    $region2: #{transition_up.3} parent=1 // loop_pre_header
      _
    $region3: #{transition_up.3} parent=1 // loop_header
      %s16 = sphi 0, %s20
      %p17 = scmp.ge.s32.totalorder %s16, 4
      %s23 = sphi 0, %s35
      %s24 = sphi 0, %s31
      %s25 = sphi 0, %s23
      %s26 = sphi 0, %s24
      %s27 = sphi 0, %s25
      %s28 = sphi 0, %s26
      %s38 = sphi 0, %s40
      %s41 = sphi 0, %s38
      %s42 = sphi 0, %s41
      %s58 = sphi 0, %s42
      %s64 = sphi 0, %s66
      %s67 = sphi 0, %s64
      %s68 = sphi 0, %s67
      %s84 = sphi 0, %s68
      %s92 = sphi 0, %s94
      %s95 = sphi 0, %s92
      %s96 = sphi 0, %s95
      %s112 = sphi 0, %s96
      %s120 = sphi 0, %s122
      %s123 = sphi 0, %s120
      %s124 = sphi 0, %s123
      %s140 = sphi 0, %s124
      %s144 = sphi 0, %s144
      %s146 = sphi 0, %s144
      %s147 = sphi 0, %s146
      %s161 = sphi 0, %s147
      %s165 = sphi 0, %s165
      %s167 = sphi 0, %s165
      %s168 = sphi 0, %s167
      %s182 = sphi 0, %s168
      %s186 = sphi 0, %s186
      %s188 = sphi 0, %s186
      %s189 = sphi 0, %s188
      %s203 = sphi 0, %s189
      %s211 = sphi 0, %s213
      %s214 = sphi 0, %s211
      %s215 = sphi 0, %s214
      %s231 = sphi 0, %s215
    $region4: #{transition_up.3} parent=1 // loop_header_branch
      %19 = sbr.rel (%p17) target = $region8
    $region5: #{transition_up.3} parent=1 // loop_body
      %s21 = ssub.s32 %s16, 1
      %s22 = ssub.s32 %s16, 2
      %s29 = sadd.s32 1, %s24
      %p30 = scmp.ge.s32.totalorder %s29, 1
      %s31 = scalar_select %p30, 0, %s29
      %s32 = sadd.s32 1, %s23
      %s33 = scalar_select %p30, %s32, %s23
      %p34 = scmp.ge.s32.totalorder %s33, 2
      %s35 = scalar_select %p34, 0, %s33
      %s36 = ssub.s32 %s23, %s35
      %p37 = scmp.eq.s32.totalorder %s36, 0
      %s39 = sadd.s32 %s38, 1
      %s40 = scalar_select %p37, %s38, %s39
      %p43 = pneg %p37
      %p44 = scmp.eq.s32.totalorder %s16, 1
      %p45 = por %p43, %p44
      %p46 = scmp.ne.s32.totalorder %s38, %s41
      %p47 = scmp.eq.s32.totalorder %s16, 0
      %p48 = por %p46, %p47
      %p49 = scmp.ne.s32.totalorder %s38, %s41
      %p50 = scmp.eq.s32.totalorder %s21, 1
      %p51 = por %p49, %p50
      %p52 = scmp.ne.s32.totalorder %s41, %s42
      %p53 = scmp.eq.s32.totalorder %s21, 0
      %p54 = por %p52, %p53
      %p55 = scmp.ne.s32.totalorder %s41, %s42
      %p56 = scmp.eq.s32.totalorder %s22, 1
      %p57 = por %p55, %p56
      %p59 = scmp.ne.s32.totalorder %s42, %s58
      %p60 = scmp.eq.s32.totalorder %s22, 0
      %p61 = por %p59, %p60
      %s62 = ssub.s32 %s23, %s35
      %p63 = scmp.eq.s32.totalorder %s62, 0
      %s65 = sadd.s32 %s64, 1
      %s66 = scalar_select %p63, %s64, %s65
      %p69 = pneg %p63
      %p70 = scmp.eq.s32.totalorder %s16, 1
      %p71 = por %p69, %p70
      %p72 = scmp.ne.s32.totalorder %s64, %s67
      %p73 = scmp.eq.s32.totalorder %s16, 0
      %p74 = por %p72, %p73
      %p75 = scmp.ne.s32.totalorder %s64, %s67
      %p76 = scmp.eq.s32.totalorder %s21, 1
      %p77 = por %p75, %p76
      %p78 = scmp.ne.s32.totalorder %s67, %s68
      %p79 = scmp.eq.s32.totalorder %s21, 0
      %p80 = por %p78, %p79
      %p81 = scmp.ne.s32.totalorder %s67, %s68
      %p82 = scmp.eq.s32.totalorder %s22, 1
      %p83 = por %p81, %p82
      %p85 = scmp.ne.s32.totalorder %s68, %s84
      %p86 = scmp.eq.s32.totalorder %s22, 0
      %p87 = por %p85, %p86
      %s88 = ssub.s32 %s23, %s35
      %s89 = ssub.s32 %s24, %s31
      %s90 = sor.u32 %s88, %s89
      %p91 = scmp.eq.s32.totalorder %s90, 0
      %s93 = sadd.s32 %s92, 1
      %s94 = scalar_select %p91, %s92, %s93
      %p97 = pneg %p91
      %p98 = scmp.eq.s32.totalorder %s16, 1
      %p99 = por %p97, %p98
      %p100 = scmp.ne.s32.totalorder %s92, %s95
      %p101 = scmp.eq.s32.totalorder %s16, 0
      %p102 = por %p100, %p101
      %p103 = scmp.ne.s32.totalorder %s92, %s95
      %p104 = scmp.eq.s32.totalorder %s21, 1
      %p105 = por %p103, %p104
      %p106 = scmp.ne.s32.totalorder %s95, %s96
      %p107 = scmp.eq.s32.totalorder %s21, 0
      %p108 = por %p106, %p107
      %p109 = scmp.ne.s32.totalorder %s95, %s96
      %p110 = scmp.eq.s32.totalorder %s22, 1
      %p111 = por %p109, %p110
      %p113 = scmp.ne.s32.totalorder %s96, %s112
      %p114 = scmp.eq.s32.totalorder %s22, 0
      %p115 = por %p113, %p114
      %s116 = ssub.s32 %s23, %s35
      %s117 = ssub.s32 %s24, %s31
      %s118 = sor.u32 %s116, %s117
      %p119 = scmp.eq.s32.totalorder %s118, 0
      %s121 = sadd.s32 %s120, 1
      %s122 = scalar_select %p119, %s120, %s121
      %p125 = pneg %p119
      %p126 = scmp.eq.s32.totalorder %s16, 1
      %p127 = por %p125, %p126
      %p128 = scmp.ne.s32.totalorder %s120, %s123
      %p129 = scmp.eq.s32.totalorder %s16, 0
      %p130 = por %p128, %p129
      %p131 = scmp.ne.s32.totalorder %s120, %s123
      %p132 = scmp.eq.s32.totalorder %s21, 1
      %p133 = por %p131, %p132
      %p134 = scmp.ne.s32.totalorder %s123, %s124
      %p135 = scmp.eq.s32.totalorder %s21, 0
      %p136 = por %p134, %p135
      %p137 = scmp.ne.s32.totalorder %s123, %s124
      %p138 = scmp.eq.s32.totalorder %s22, 1
      %p139 = por %p137, %p138
      %p141 = scmp.ne.s32.totalorder %s124, %s140
      %p142 = scmp.eq.s32.totalorder %s22, 0
      %p143 = por %p141, %p142
      %s145 = sadd.s32 %s144, 1
      %p148 = scmp.eq.s32.totalorder %s16, 1
      %p149 = scmp.ne.s32.totalorder %s144, %s146
      %p150 = scmp.eq.s32.totalorder %s16, 0
      %p151 = por %p149, %p150
      %p152 = scmp.ne.s32.totalorder %s144, %s146
      %p153 = scmp.eq.s32.totalorder %s21, 1
      %p154 = por %p152, %p153
      %p155 = scmp.ne.s32.totalorder %s146, %s147
      %p156 = scmp.eq.s32.totalorder %s21, 0
      %p157 = por %p155, %p156
      %p158 = scmp.ne.s32.totalorder %s146, %s147
      %p159 = scmp.eq.s32.totalorder %s22, 1
      %p160 = por %p158, %p159
      %p162 = scmp.ne.s32.totalorder %s147, %s161
      %p163 = scmp.eq.s32.totalorder %s22, 0
      %p164 = por %p162, %p163
      %s166 = sadd.s32 %s165, 1
      %p169 = scmp.eq.s32.totalorder %s16, 1
      %p170 = scmp.ne.s32.totalorder %s165, %s167
      %p171 = scmp.eq.s32.totalorder %s16, 0
      %p172 = por %p170, %p171
      %p173 = scmp.ne.s32.totalorder %s165, %s167
      %p174 = scmp.eq.s32.totalorder %s21, 1
      %p175 = por %p173, %p174
      %p176 = scmp.ne.s32.totalorder %s167, %s168
      %p177 = scmp.eq.s32.totalorder %s21, 0
      %p178 = por %p176, %p177
      %p179 = scmp.ne.s32.totalorder %s167, %s168
      %p180 = scmp.eq.s32.totalorder %s22, 1
      %p181 = por %p179, %p180
      %p183 = scmp.ne.s32.totalorder %s168, %s182
      %p184 = scmp.eq.s32.totalorder %s22, 0
      %p185 = por %p183, %p184
      %s187 = sadd.s32 %s186, 1
      %p190 = scmp.eq.s32.totalorder %s16, 1
      %p191 = scmp.ne.s32.totalorder %s186, %s188
      %p192 = scmp.eq.s32.totalorder %s16, 0
      %p193 = por %p191, %p192
      %p194 = scmp.ne.s32.totalorder %s186, %s188
      %p195 = scmp.eq.s32.totalorder %s21, 1
      %p196 = por %p194, %p195
      %p197 = scmp.ne.s32.totalorder %s188, %s189
      %p198 = scmp.eq.s32.totalorder %s21, 0
      %p199 = por %p197, %p198
      %p200 = scmp.ne.s32.totalorder %s188, %s189
      %p201 = scmp.eq.s32.totalorder %s22, 1
      %p202 = por %p200, %p201
      %p204 = scmp.ne.s32.totalorder %s189, %s203
      %p205 = scmp.eq.s32.totalorder %s22, 0
      %p206 = por %p204, %p205
      %s207 = ssub.s32 %s23, %s35
      %s208 = ssub.s32 %s24, %s31
      %s209 = sor.u32 %s207, %s208
      %p210 = scmp.eq.s32.totalorder %s209, 0
      %s212 = sadd.s32 %s211, 1
      %s213 = scalar_select %p210, %s211, %s212
      %p216 = pneg %p210
      %p217 = scmp.eq.s32.totalorder %s16, 1
      %p218 = por %p216, %p217
      %p219 = scmp.ne.s32.totalorder %s211, %s214
      %p220 = scmp.eq.s32.totalorder %s16, 0
      %p221 = por %p219, %p220
      %p222 = scmp.ne.s32.totalorder %s211, %s214
      %p223 = scmp.eq.s32.totalorder %s21, 1
      %p224 = por %p222, %p223
      %p225 = scmp.ne.s32.totalorder %s214, %s215
      %p226 = scmp.eq.s32.totalorder %s21, 0
      %p227 = por %p225, %p226
      %p228 = scmp.ne.s32.totalorder %s214, %s215
      %p229 = scmp.eq.s32.totalorder %s22, 1
      %p230 = por %p228, %p229
      %p232 = scmp.ne.s32.totalorder %s215, %s231
      %p233 = scmp.eq.s32.totalorder %s22, 0
      %p234 = por %p232, %p233
      %p235 = scmp.le.s32.totalorder 1, %s16
      %p236 = scmp.lt.s32.totalorder %s16, 3
      %p237 = pnand %p235, %p236
      %p238 = pneg %p237
      // Predicated region
      $region9: #{transition_up.3} parent=5 // pred_check
        _
      $region10: #{transition_up.3} parent=5 // pred_check_branch
        %240 = sbr.rel (%p237) target = $region12
      $region11: #{transition_up.3} parent=5 // pred_region
        %s241 = ssub.s32 %s16, 1
        // Predicated region
        $region13: #{transition_up.3} parent=11 // pred_check
          %p242 = pneg %p157
        $region14: #{transition_up.3} parent=11 // pred_check_branch
          %244 = sbr.rel (%p242) target = $region16
        $region15: #{transition_up.3} parent=11 // pred_region
          _
        $region16: #{transition_up.3} parent=11 // pred_fallthru
          _
        // Predicated region
        $region17: #{transition_up.3} parent=11 // pred_check
          %p245 = pneg %p178
        $region18: #{transition_up.3} parent=11 // pred_check_branch
          %247 = sbr.rel (%p245) target = $region20
        $region19: #{transition_up.3} parent=11 // pred_region
          _
        $region20: #{transition_up.3} parent=11 // pred_fallthru
          _
        // Predicated region
        $region21: #{transition_up.3} parent=11 // pred_check
          %p248 = pneg %p199
        $region22: #{transition_up.3} parent=11 // pred_check_branch
          %250 = sbr.rel (%p248) target = $region24
        $region23: #{transition_up.3} parent=11 // pred_region
          _
        $region24: #{transition_up.3} parent=11 // pred_fallthru
          _
      $region12: #{transition_up.3} parent=5 // pred_fallthru
        _
      %p251 = scmp.lt.s32.totalorder %s16, 2
      // Predicated region
      $region25: #{transition_up.3} parent=5 // pred_check
        %p252 = pneg %p251
      $region26: #{transition_up.3} parent=5 // pred_check_branch
        %254 = sbr.rel (%p252) target = $region28
      $region27: #{transition_up.3} parent=5 // pred_region
        // Predicated region
        $region29: #{transition_up.3} parent=27 // pred_check
          %p255 = pneg %p48
        $region30: #{transition_up.3} parent=27 // pred_check_branch
          %257 = sbr.rel (%p255) target = $region32
        $region31: #{transition_up.3} parent=27 // pred_region
          %p258 = scmp.lt.s32.totalorder %s23, 1
          %s259 = scalar_select %p258, %s23, 1
          %s260 = smul.addr %s259, 4
          %s261 = scalar_lea.vmem %s0, %s260
        $region32: #{transition_up.3} parent=27 // pred_fallthru
          _
        // Predicated region
        $region33: #{transition_up.3} parent=27 // pred_check
          %p262 = pneg %p74
        $region34: #{transition_up.3} parent=27 // pred_check_branch
          %264 = sbr.rel (%p262) target = $region36
        $region35: #{transition_up.3} parent=27 // pred_region
          %p265 = scmp.lt.s32.totalorder %s23, 1
          %s266 = scalar_select %p265, %s23, 1
          %s267 = smul.addr %s266, 16
          %s268 = smul.addr %s267, 8
          %s269 = scalar_lea.vmem %s1, %s268
        $region36: #{transition_up.3} parent=27 // pred_fallthru
          _
        // Predicated region
        $region37: #{transition_up.3} parent=27 // pred_check
          %p270 = pneg %p102
        $region38: #{transition_up.3} parent=27 // pred_check_branch
          %272 = sbr.rel (%p270) target = $region40
        $region39: #{transition_up.3} parent=27 // pred_region
          %s273 = smul.u32 2, %s24
          %p274 = scmp.lt.s32.totalorder %s23, 1
          %s275 = scalar_select %p274, %s23, 1
          %p276 = scmp.lt.s32.totalorder %s273, 1
          %s277 = scalar_select %p276, %s273, 1
          %s278 = smul.addr %s275, 2
          %s279 = sadd.s32 %s277, %s278
          %s280 = smul.addr %s279, 8
          %s281 = scalar_lea.vmem %s2, %s280
          %s282 = smul.u32 2, %s24
        $region40: #{transition_up.3} parent=27 // pred_fallthru
          _
        // Predicated region
        $region41: #{transition_up.3} parent=27 // pred_check
          %p283 = pneg %p130
        $region42: #{transition_up.3} parent=27 // pred_check_branch
          %285 = sbr.rel (%p283) target = $region44
        $region43: #{transition_up.3} parent=27 // pred_region
          %s286 = smul.u32 2, %s24
          %p287 = scmp.lt.s32.totalorder %s23, 1
          %s288 = scalar_select %p287, %s23, 1
          %p289 = scmp.lt.s32.totalorder %s286, 1
          %s290 = scalar_select %p289, %s286, 1
          %s291 = smul.addr %s288, 2
          %s292 = sadd.s32 %s290, %s291
          %s293 = smul.addr %s292, 8
          %s294 = scalar_lea.vmem %s3, %s293
          %s295 = smul.u32 2, %s24
        $region44: #{transition_up.3} parent=27 // pred_fallthru
          _
      $region28: #{transition_up.3} parent=5 // pred_fallthru
        _
      %p296 = scmp.le.s32.totalorder 1, %s16
      %p297 = scmp.lt.s32.totalorder %s16, 3
      %p298 = pnand %p296, %p297
      %p299 = pneg %p298
      // Predicated region
      $region45: #{transition_up.3} parent=5 // pred_check
        _
      $region46: #{transition_up.3} parent=5 // pred_check_branch
        %301 = sbr.rel (%p298) target = $region48
      $region47: #{transition_up.3} parent=5 // pred_region
        %s302 = ssub.s32 %s16, 1
        %p303 = scmp.lt.s32.totalorder %s25, 1
        %s304 = scalar_select %p303, %s25, 1
        %s305 = smul.addr %s304, 4
        %s306 = scalar_lea.vmem %s0, %s305
        %p307 = pneg %p54
        %p308 = pneg %p51
        %p309 = scmp.lt.s32.totalorder %s25, 1
        %s310 = scalar_select %p309, %s25, 1
        %s311 = smul.addr %s310, 16
        %s312 = smul.addr %s311, 8
        %s313 = scalar_lea.vmem %s1, %s312
        %p314 = pneg %p80
        %p315 = pneg %p77
        %s316 = smul.u32 2, %s26
        %p317 = scmp.lt.s32.totalorder %s25, 1
        %s318 = scalar_select %p317, %s25, 1
        %p319 = scmp.lt.s32.totalorder %s316, 1
        %s320 = scalar_select %p319, %s316, 1
        %s321 = smul.addr %s318, 2
        %s322 = sadd.s32 %s320, %s321
        %s323 = smul.addr %s322, 8
        %s324 = scalar_lea.vmem %s2, %s323
        %p325 = pneg %p108
        %p326 = pneg %p105
        %s327 = smul.u32 2, %s26
        %p328 = scmp.lt.s32.totalorder %s25, 1
        %s329 = scalar_select %p328, %s25, 1
        %p330 = scmp.lt.s32.totalorder %s327, 1
        %s331 = scalar_select %p330, %s327, 1
        %s332 = smul.addr %s329, 2
        %s333 = sadd.s32 %s331, %s332
        %s334 = smul.addr %s333, 8
        %s335 = scalar_lea.vmem %s3, %s334
        %p336 = pneg %p136
        %p337 = pneg %p133
        %p338 = pneg %p157
        %p339 = pneg %p154
        %p340 = pneg %p178
        %p341 = pneg %p175
        %p342 = pneg %p199
        %p343 = pneg %p196
        %p344 = pneg %p227
        %p345 = pneg %p224
        %s346 = sand.u32 %s214, 1
        %s347 = scalar_lea.sflag [#allocation3], %s346
        %s348 = sand.u32 %s214, 1
        %s349 = smul.addr %s348, 16
        %s350 = scalar_lea.vmem [#allocation2], %s349
        %p351 = scmp.lt.s32.totalorder %s25, 1
        %s352 = scalar_select %p351, %s25, 1
        %s353 = smul.addr %s352, 4
        %s354 = scalar_lea.vmem %s0, %s353
        %p355 = scmp.lt.s32.totalorder %s25, 1
        %s356 = scalar_select %p355, %s25, 1
        %s357 = smul.addr %s356, 16
        %s358 = smul.addr %s357, 8
        %s359 = scalar_lea.vmem %s1, %s358
        %s360 = smul.u32 2, %s26
        %p361 = scmp.lt.s32.totalorder %s25, 1
        %s362 = scalar_select %p361, %s25, 1
        %p363 = scmp.lt.s32.totalorder %s360, 1
        %s364 = scalar_select %p363, %s360, 1
        %s365 = smul.addr %s362, 2
        %s366 = sadd.s32 %s364, %s365
        %s367 = smul.addr %s366, 8
        %s368 = scalar_lea.vmem %s2, %s367
        %s369 = smul.u32 2, %s26
        %s370 = smul.u32 2, %s26
        %p371 = scmp.lt.s32.totalorder %s25, 1
        %s372 = scalar_select %p371, %s25, 1
        %p373 = scmp.lt.s32.totalorder %s370, 1
        %s374 = scalar_select %p373, %s370, 1
        %s375 = smul.addr %s372, 2
        %s376 = sadd.s32 %s374, %s375
        %s377 = smul.addr %s376, 8
        %s378 = scalar_lea.vmem %s3, %s377
        %s379 = smul.u32 2, %s26
        %s380 = smul.u32 2, %s26
        %v381 = vld [vmem:[%s378] sm:$0xff]
        %v382 = vld [vmem:[%s378 + $0x8] sm:$0xff]
        %v383 = vld [vmem:[%s4] sm:$0xff]
        %vm384 = vcmask 64512
        %v386 = vsel %vm384, %v381, 0
        %v389 = vsel %vm384, %v382, 0
        %391 = vmatpush.msra.mxu0 0.0
        %392 = vmatpush.msra.mxu0 0.0
        %393 = vmatpush.msra.mxu0 0.0
        %394 = vmatpush.msra.mxu0 0.0
        %395 = vmatpush.msra.mxu0 0.0
        %396 = vmatpush.msra.mxu0 0.0
        %397 = vmatpush.msra.mxu0 0.0
        %398 = vmatpush.msra.mxu0 0.0
        %399 = vmatpush.msra.mxu0 0.0
        %400 = vmatpush.msra.mxu0 0.0
        %401 = vmatpush.msra.mxu0 0.0
        %402 = vmatpush.msra.mxu0 0.0
        %403 = vmatpush.msra.mxu0 0.0
        %404 = vmatpush.msra.mxu0 0.0
        %405 = vmatpush.msra.mxu0 0.0
        %406 = vmatpush.msra.mxu0 %v383
        %407 = vmatmul.f32.gmra.mxu0 %v386
        %v408 = vpop.f32.mrf.mxu0
        %v409 = vadd.f32 0.0, %v408
        %410 = vmatmul.f32.gmra.mxu0 %v389
        %v411 = vpop.f32.mrf.mxu0
        %v412 = vadd.f32 0.0, %v411
        %413 = vdwg.mxu0
        %v414 = vld [vmem:[%s5] sm:$0x1]
        %v416 = vperm.slane %v414, 0
        %v418 = vmul.f32 %v409, %v416
        %v419 = vmul.f32 %v412, %v416
        %v420 = vld [vmem:[%s6] sm:$0x1]
        %v422 = vperm.slane %v420, 0
        %v424 = vadd.f32 %v418, %v422
        %v425 = vadd.f32 %v419, %v422
        %v426 = vmax.f32 %v424, 0.0
        %v427 = vmax.f32 %v425, 0.0
        %v428 = vld [vmem:[%s368] sm:$0xff]
        %v429 = vld [vmem:[%s368 + $0x8] sm:$0xff]
        %v430 = vlaneseq
        %v431 = vand.u32 %v430, 127
        %v432 = vcvt.s32.f32 %v431
        %v433 = vld [vmem:[%s354] sm:$0x7]
        %435 = vset.pattern.permute.xlu0 0
        %436 = vperm.xlu0 %435, %v428
        %v437 = vpop.permute.xlu0 %436
        %440 = vset.pattern.permute.xlu0 0
        %441 = vperm.xlu0 %440, %v429
        %v442 = vpop.permute.xlu0 %441
        %v444 = vperm.slane %v433, 0
        %v445 = vsub.f32 %v437, %v444
        %v446 = vsub.f32 %v442, %v444
        %447 = vset.pattern.permute.xlu0 1
        %448 = vperm.xlu0 %447, %v428
        %v449 = vpop.permute.xlu0 %448
        %451 = vset.pattern.permute.xlu0 1
        %452 = vperm.xlu0 %451, %v429
        %v453 = vpop.permute.xlu0 %452
        %v455 = vperm.slane %v433, 1
        %v456 = vsub.f32 %v449, %v455
        %v457 = vsub.f32 %v453, %v455
        %458 = vset.pattern.permute.xlu0 2
        %459 = vperm.xlu0 %458, %v428
        %v460 = vpop.permute.xlu0 %459
        %462 = vset.pattern.permute.xlu0 2
        %463 = vperm.xlu0 %462, %v429
        %v464 = vpop.permute.xlu0 %463
        %v466 = vperm.slane %v433, 2
        %v467 = vsub.f32 %v460, %v466
        %v468 = vsub.f32 %v464, %v466
        %v469 = vmul.f32 %v445, %v445
        %v470 = vmul.f32 %v446, %v446
        %v471 = vmul.f32 %v456, %v456
        %v472 = vmul.f32 %v457, %v457
        %v473 = vadd.f32 %v469, %v471
        %v474 = vadd.f32 %v470, %v472
        %v475 = vmul.f32 %v467, %v467
        %v476 = vmul.f32 %v468, %v468
        %v477 = vadd.f32 %v473, %v475
        %v478 = vadd.f32 %v474, %v476
        %479 = vmin.xlane.f32.xlu0 %v477
        %v480 = vpop.xlane.xlu0 %479
        %481 = vmin.xlane.f32.xlu0 %v478
        %v482 = vpop.xlane.xlu0 %481
        %vm483 = vcmp.eq.f32.partialorder %v477, %v480
        %vm484 = vcmp.eq.f32.partialorder %v478, %v482
        %v485 = vsel %vm483, %v432, 128.0
        %v486 = vsel %vm484, %v432, 128.0
        %487 = vmin.xlane.f32.xlu0 %v485
        %v488 = vpop.xlane.xlu0 %487
        %489 = vmin.xlane.f32.xlu0 %v486
        %v490 = vpop.xlane.xlu0 %489
        %vm491 = vcmp.eq.f32.partialorder %v432, %v488
        %vm492 = vcmp.eq.f32.partialorder %v432, %v490
        %v493 = vsel %vm491, 3e+38, %v477
        %v494 = vsel %vm492, 3e+38, %v478
        %v495 = vadd.f32 %v488, 0.0
        %v496 = vadd.f32 %v490, 0.0
        %vm497 = vcmp.lt.f32.partialorder %v480, 3e+38
        %vm498 = vcmp.lt.f32.partialorder %v482, 3e+38
        %v499 = vsel %vm497, %v480, 3e+38
        %v500 = vsel %vm498, %v482, 3e+38
        %v501 = vsel %vm497, %v495, 0.0
        %v502 = vsel %vm498, %v496, 0.0
        %503 = vmin.xlane.f32.xlu0 %v493
        %v504 = vpop.xlane.xlu0 %503
        %505 = vmin.xlane.f32.xlu0 %v494
        %v506 = vpop.xlane.xlu0 %505
        %vm507 = vcmp.eq.f32.partialorder %v493, %v504
        %vm508 = vcmp.eq.f32.partialorder %v494, %v506
        %v509 = vsel %vm507, %v432, 128.0
        %v510 = vsel %vm508, %v432, 128.0
        %511 = vmin.xlane.f32.xlu0 %v509
        %v512 = vpop.xlane.xlu0 %511
        %513 = vmin.xlane.f32.xlu0 %v510
        %v514 = vpop.xlane.xlu0 %513
        %vm515 = vcmp.eq.f32.partialorder %v432, %v512
        %vm516 = vcmp.eq.f32.partialorder %v432, %v514
        %v517 = vsel %vm515, 3e+38, %v493
        %v518 = vsel %vm516, 3e+38, %v494
        %v519 = vadd.f32 %v512, 0.0
        %v520 = vadd.f32 %v514, 0.0
        %vm521 = vcmp.lt.f32.partialorder %v504, %v499
        %vm522 = vcmp.lt.f32.partialorder %v506, %v500
        %vm523 = vcmp.lt.f32.partialorder %v504, 3e+38
        %vm524 = vcmp.lt.f32.partialorder %v506, 3e+38
        %v525 = vsel %vm523, %v504, 3e+38
        %v526 = vsel %vm524, %v506, 3e+38
        %v527 = vsel %vm523, %v519, 0.0
        %v528 = vsel %vm524, %v520, 0.0
        %v529 = vsel %vm521, %v499, %v525
        %v530 = vsel %vm522, %v500, %v526
        %v531 = vsel %vm521, %v501, %v527
        %v532 = vsel %vm522, %v502, %v528
        %v533 = vsel %vm521, %v504, %v499
        %v534 = vsel %vm522, %v506, %v500
        %v535 = vsel %vm521, %v519, %v501
        %v536 = vsel %vm522, %v520, %v502
        %537 = vmin.xlane.f32.xlu0 %v517
        %v538 = vpop.xlane.xlu0 %537
        %539 = vmin.xlane.f32.xlu0 %v518
        %v540 = vpop.xlane.xlu0 %539
        %vm541 = vcmp.eq.f32.partialorder %v517, %v538
        %vm542 = vcmp.eq.f32.partialorder %v518, %v540
        %v543 = vsel %vm541, %v432, 128.0
        %v544 = vsel %vm542, %v432, 128.0
        %545 = vmin.xlane.f32.xlu0 %v543
        %v546 = vpop.xlane.xlu0 %545
        %547 = vmin.xlane.f32.xlu0 %v544
        %v548 = vpop.xlane.xlu0 %547
        %v549 = vadd.f32 %v546, 0.0
        %v550 = vadd.f32 %v548, 0.0
        %vm551 = vcmp.lt.f32.partialorder %v538, %v533
        %vm552 = vcmp.lt.f32.partialorder %v540, %v534
        %vm553 = vcmp.lt.f32.partialorder %v538, %v529
        %vm554 = vcmp.lt.f32.partialorder %v540, %v530
        %vm555 = vcmp.lt.f32.partialorder %v538, 3e+38
        %vm556 = vcmp.lt.f32.partialorder %v540, 3e+38
        %v557 = vsel %vm555, %v538, 3e+38
        %v558 = vsel %vm556, %v540, 3e+38
        %v559 = vsel %vm553, %v529, %v557
        %v560 = vsel %vm554, %v530, %v558
        %v561 = vsel %vm555, %v549, 0.0
        %v562 = vsel %vm556, %v550, 0.0
        %v563 = vsel %vm553, %v531, %v561
        %v564 = vsel %vm554, %v532, %v562
        %v565 = vsel %vm553, %v538, %v529
        %v566 = vsel %vm554, %v540, %v530
        %v567 = vsel %vm551, %v533, %v565
        %v568 = vsel %vm552, %v534, %v566
        %v569 = vsel %vm553, %v549, %v531
        %v570 = vsel %vm554, %v550, %v532
        %v571 = vsel %vm551, %v535, %v569
        %v572 = vsel %vm552, %v536, %v570
        %v573 = vsel %vm551, %v538, %v533
        %v574 = vsel %vm552, %v540, %v534
        %v575 = vsel %vm551, %v549, %v535
        %v576 = vsel %vm552, %v550, %v536
        %v577 = vadd.f32 %v573, 1e-08
        %v578 = vadd.f32 %v574, 1e-08
        %v579 = vrcp.pop %v577
        %v580 = vmul.f32 %v577, %v579
        %v581 = vsub.f32 1.0, %v580
        %v582 = vmul.f32 %v579, %v581
        %v583 = vadd.f32 %v579, %v582
        %vm584 = vweird.f32 %v577
        %vm585 = vweird.f32 %v579
        %vm586 = vmor %vm584, %vm585
        %v587 = vsel %vm586, %v579, %v583
        %v588 = vand.u32 2147483647, %v577
        %vm589 = vcmp.eq.f32.partialorder %v588, 8.507059e+37
        %v590 = vand.u32 %v577, 2147483648
        %v591 = vor.u32 1.1754944e-38, %v590
        %v592 = vsel %vm589, %v591, %v587
        %v593 = vrcp.pop %v578
        %v594 = vmul.f32 %v578, %v593
        %v595 = vsub.f32 1.0, %v594
        %v596 = vmul.f32 %v593, %v595
        %v597 = vadd.f32 %v593, %v596
        %vm598 = vweird.f32 %v578
        %vm599 = vweird.f32 %v593
        %vm600 = vmor %vm598, %vm599
        %v601 = vsel %vm600, %v593, %v597
        %v602 = vand.u32 2147483647, %v578
        %vm603 = vcmp.eq.f32.partialorder %v602, 8.507059e+37
        %v604 = vand.u32 %v578, 2147483648
        %v605 = vor.u32 1.1754944e-38, %v604
        %v606 = vsel %vm603, %v605, %v601
        %v607 = vadd.f32 %v567, 1e-08
        %v608 = vadd.f32 %v568, 1e-08
        %v609 = vrcp.pop %v607
        %v610 = vmul.f32 %v607, %v609
        %v611 = vsub.f32 1.0, %v610
        %v612 = vmul.f32 %v609, %v611
        %v613 = vadd.f32 %v609, %v612
        %vm614 = vweird.f32 %v607
        %vm615 = vweird.f32 %v609
        %vm616 = vmor %vm614, %vm615
        %v617 = vsel %vm616, %v609, %v613
        %v618 = vand.u32 2147483647, %v607
        %vm619 = vcmp.eq.f32.partialorder %v618, 8.507059e+37
        %v620 = vand.u32 %v607, 2147483648
        %v621 = vor.u32 1.1754944e-38, %v620
        %v622 = vsel %vm619, %v621, %v617
        %v623 = vrcp.pop %v608
        %v624 = vmul.f32 %v608, %v623
        %v625 = vsub.f32 1.0, %v624
        %v626 = vmul.f32 %v623, %v625
        %v627 = vadd.f32 %v623, %v626
        %vm628 = vweird.f32 %v608
        %vm629 = vweird.f32 %v623
        %vm630 = vmor %vm628, %vm629
        %v631 = vsel %vm630, %v623, %v627
        %v632 = vand.u32 2147483647, %v608
        %vm633 = vcmp.eq.f32.partialorder %v632, 8.507059e+37
        %v634 = vand.u32 %v608, 2147483648
        %v635 = vor.u32 1.1754944e-38, %v634
        %v636 = vsel %vm633, %v635, %v631
        %v637 = vadd.f32 %v559, 1e-08
        %v638 = vadd.f32 %v560, 1e-08
        %v639 = vrcp.pop %v637
        %v640 = vmul.f32 %v637, %v639
        %v641 = vsub.f32 1.0, %v640
        %v642 = vmul.f32 %v639, %v641
        %v643 = vadd.f32 %v639, %v642
        %vm644 = vweird.f32 %v637
        %vm645 = vweird.f32 %v639
        %vm646 = vmor %vm644, %vm645
        %v647 = vsel %vm646, %v639, %v643
        %v648 = vand.u32 2147483647, %v637
        %vm649 = vcmp.eq.f32.partialorder %v648, 8.507059e+37
        %v650 = vand.u32 %v637, 2147483648
        %v651 = vor.u32 1.1754944e-38, %v650
        %v652 = vsel %vm649, %v651, %v647
        %v653 = vrcp.pop %v638
        %v654 = vmul.f32 %v638, %v653
        %v655 = vsub.f32 1.0, %v654
        %v656 = vmul.f32 %v653, %v655
        %v657 = vadd.f32 %v653, %v656
        %vm658 = vweird.f32 %v638
        %vm659 = vweird.f32 %v653
        %vm660 = vmor %vm658, %vm659
        %v661 = vsel %vm660, %v653, %v657
        %v662 = vand.u32 2147483647, %v638
        %vm663 = vcmp.eq.f32.partialorder %v662, 8.507059e+37
        %v664 = vand.u32 %v638, 2147483648
        %v665 = vor.u32 1.1754944e-38, %v664
        %v666 = vsel %vm663, %v665, %v661
        %v667 = vadd.f32 %v592, %v622
        %v668 = vadd.f32 %v606, %v636
        %v669 = vadd.f32 %v667, %v652
        %v670 = vadd.f32 %v668, %v666
        %v671 = vrcp.pop %v669
        %v672 = vmul.f32 %v669, %v671
        %v673 = vsub.f32 1.0, %v672
        %v674 = vmul.f32 %v671, %v673
        %v675 = vadd.f32 %v671, %v674
        %vm676 = vweird.f32 %v669
        %vm677 = vweird.f32 %v671
        %vm678 = vmor %vm676, %vm677
        %v679 = vsel %vm678, %v671, %v675
        %v680 = vand.u32 2147483647, %v669
        %vm681 = vcmp.eq.f32.partialorder %v680, 8.507059e+37
        %v682 = vand.u32 %v669, 2147483648
        %v683 = vor.u32 1.1754944e-38, %v682
        %v684 = vsel %vm681, %v683, %v679
        %v685 = vrcp.pop %v670
        %v686 = vmul.f32 %v670, %v685
        %v687 = vsub.f32 1.0, %v686
        %v688 = vmul.f32 %v685, %v687
        %v689 = vadd.f32 %v685, %v688
        %vm690 = vweird.f32 %v670
        %vm691 = vweird.f32 %v685
        %vm692 = vmor %vm690, %vm691
        %v693 = vsel %vm692, %v685, %v689
        %v694 = vand.u32 2147483647, %v670
        %vm695 = vcmp.eq.f32.partialorder %v694, 8.507059e+37
        %v696 = vand.u32 %v670, 2147483648
        %v697 = vor.u32 1.1754944e-38, %v696
        %v698 = vsel %vm695, %v697, %v693
        %v699 = vadd.f32 %v432, 0.0
        %vm700 = vcmp.eq.f32.partialorder %v699, %v575
        %vm701 = vcmp.eq.f32.partialorder %v699, %v576
        %v702 = vsel %vm700, %v592, 0.0
        %v703 = vsel %vm701, %v606, 0.0
        %vm704 = vcmp.eq.f32.partialorder %v699, %v571
        %vm705 = vcmp.eq.f32.partialorder %v699, %v572
        %v706 = vsel %vm704, %v622, %v702
        %v707 = vsel %vm705, %v636, %v703
        %vm708 = vcmp.eq.f32.partialorder %v699, %v563
        %vm709 = vcmp.eq.f32.partialorder %v699, %v564
        %v710 = vsel %vm708, %v652, %v706
        %v711 = vsel %vm709, %v666, %v707
        %v712 = vld [vmem:[%s359] sm:$0xff]
        %v713 = vld [vmem:[%s359 + $0x8] sm:$0xff]
        %v714 = vld [vmem:[%s359 + $0x10] sm:$0xff]
        %v715 = vld [vmem:[%s359 + $0x18] sm:$0xff]
        %v716 = vld [vmem:[%s359 + $0x20] sm:$0xff]
        %v717 = vld [vmem:[%s359 + $0x28] sm:$0xff]
        %v718 = vld [vmem:[%s359 + $0x30] sm:$0xff]
        %v719 = vld [vmem:[%s359 + $0x38] sm:$0xff]
        %v720 = vld [vmem:[%s359 + $0x40] sm:$0xff]
        %v721 = vld [vmem:[%s359 + $0x48] sm:$0xff]
        %v722 = vld [vmem:[%s359 + $0x50] sm:$0xff]
        %v723 = vld [vmem:[%s359 + $0x58] sm:$0xff]
        %v724 = vld [vmem:[%s359 + $0x60] sm:$0xff]
        %v725 = vld [vmem:[%s359 + $0x68] sm:$0xff]
        %v726 = vld [vmem:[%s359 + $0x70] sm:$0xff]
        %v727 = vld [vmem:[%s359 + $0x78] sm:$0xff]
        %728 = vmatpush.msra.mxu0 %v727
        %729 = vmatpush.msra.mxu0 %v726
        %730 = vmatpush.msra.mxu0 %v725
        %731 = vmatpush.msra.mxu0 %v724
        %732 = vmatpush.msra.mxu0 %v723
        %733 = vmatpush.msra.mxu0 %v722
        %734 = vmatpush.msra.mxu0 %v721
        %735 = vmatpush.msra.mxu0 %v720
        %736 = vmatpush.msra.mxu0 %v719
        %737 = vmatpush.msra.mxu0 %v718
        %738 = vmatpush.msra.mxu0 %v717
        %739 = vmatpush.msra.mxu0 %v716
        %740 = vmatpush.msra.mxu0 %v715
        %741 = vmatpush.msra.mxu0 %v714
        %742 = vmatpush.msra.mxu0 %v713
        %743 = vmatpush.msra.mxu0 %v712
        %744 = vmatmul.f32.gmra.mxu0 %v710
        %v745 = vpop.f32.mrf.mxu0
        %v746 = vadd.f32 0.0, %v745
        %747 = vmatmul.f32.gmra.mxu0 %v711
        %v748 = vpop.f32.mrf.mxu0
        %v749 = vadd.f32 0.0, %v748
        %750 = vdwg.mxu0
        %v751 = vmul.f32 %v746, %v684
        %v752 = vmul.f32 %v749, %v698
        %v753 = vadd.f32 %v751, %v426
        %v754 = vadd.f32 %v752, %v427
        %755 = vst [vmem:[%s350] sm:$0xff] %v753
        %756 = vst [vmem:[%s350 + $0x8] sm:$0xff] %v754
        %s757 = sand.u32 %s214, 1
        %s758 = scalar_lea.sflag [#allocation3], %s757
        %s759 = sand.u32 %s214, 1
        %s760 = smul.addr %s759, 16
        %s761 = scalar_lea.vmem [#allocation2], %s760
        // Predicated region
        $region49: #{transition_up.3} parent=47 // pred_check
          %p762 = pneg %p224
        $region50: #{transition_up.3} parent=47 // pred_check_branch
          %764 = sbr.rel (%p762) target = $region52
        $region51: #{transition_up.3} parent=47 // pred_region
          %s765 = smul.u32 2, %s26
          %767 = vsyncadd %s758, 0
          %s768 = smul.addr %s25, 2
          %s769 = sadd.s32 %s765, %s768
          %s770 = smul.addr %s769, 8
          %s771 = scalar_lea.hbm %s7, %s770
          %s772 = sshll.u32 %s761, 4
          %s773 = int_to_ptr.vmem [resolvable:$true] %s772
          %s774 = sshll.u32 %s771, 4
          %s775 = int_to_ptr.hbm [resolvable:$true] %s774
          %780 = dma.vmem_to_hbm [thread:$0]  %s773, 256, %s775, %s758, 128, 128, 8
        $region52: #{transition_up.3} parent=47 // pred_fallthru
          _
      $region48: #{transition_up.3} parent=5 // pred_fallthru
        _
      %p781 = scmp.le.s32.totalorder 2, %s16
      // Predicated region
      $region53: #{transition_up.3} parent=5 // pred_check
        %p782 = pneg %p781
      $region54: #{transition_up.3} parent=5 // pred_check_branch
        %784 = sbr.rel (%p782) target = $region56
      $region55: #{transition_up.3} parent=5 // pred_region
        %s785 = ssub.s32 %s16, 2
        // Predicated region
        $region57: #{transition_up.3} parent=55 // pred_check
          %p786 = pneg %p230
        $region58: #{transition_up.3} parent=55 // pred_check_branch
          %788 = sbr.rel (%p786) target = $region60
        $region59: #{transition_up.3} parent=55 // pred_region
          %s789 = sand.u32 %s215, 1
          %s790 = scalar_lea.sflag [#allocation3], %s789
          %s791 = sand.u32 %s215, 1
          %s792 = smul.addr %s791, 16
          %s793 = scalar_lea.vmem [#allocation2], %s792
          %795 = dma.done %s790, 256
        $region60: #{transition_up.3} parent=55 // pred_fallthru
          _
      $region56: #{transition_up.3} parent=5 // pred_fallthru
        _
    $region6: #{transition_up.3} parent=1 // loop_footer
      %s20 = sadd.s32 1, %s16
    $region7: #{transition_up.3} parent=1 // loop_footer_branch
      %15 = sbr.rel target = $region3
    $region8: #{transition_up.3} parent=1 // loop_exit
      _
    %796 = vsyncpa [#allocation3], 1
    %s797 = scalar_lea.sflag [#allocation3], 1
    %798 = vsyncpa %s797, 1

</llo_original>
